<compile_context>
chip_gen: v7x
topology: tpu7x:2x2x1
jax: 0.10.0
libtpu: 0.0.40
codegen_flags: <defaults>
</compile_context>

<pallas_src>
import jax
import jax.numpy as jnp
from jax.experimental import pallas as pl
from jax.experimental.pallas import tpu as pltpu


def _round_up(x, m):
    return (x + m - 1) // m * m


def _make_kernel(use_bf16):
    lhs_dtype = jnp.bfloat16 if use_bf16 else jnp.float32

    def kernel(
        x_ref,
        w1_ref, b1_ref,
        w2_ref, b2_ref,
        w3_ref, b3_ref,
        w4_ref, b4_ref,
        w5_ref, b5_ref,
        w6_ref, b6_ref,
        w7_ref, b7_ref,          # w7 is a lane-dense (1, out_dim) f32 row vector
        logits_ref,              # (1, bb) lane-dense output block
    ):
        def linear(h, w_ref, b_ref):
            # Weights already live in the MXU operand dtype (bf16 when
            # use_bf16) -> no in-kernel convert pass.  Accumulate in f32;
            # bias add / ReLU / tanh stay f32.
            return jnp.dot(h.astype(lhs_dtype), w_ref[...],
                           preferred_element_type=jnp.float32) + b_ref[...]

        h = x_ref[...].astype(jnp.float32)
        h = jnp.maximum(linear(h, w1_ref, b1_ref), 0.0)   # Linear + ReLU
        h = jnp.maximum(linear(h, w2_ref, b2_ref), 0.0)   # Linear + ReLU
        h = jnp.maximum(linear(h, w3_ref, b3_ref), 0.0)   # Linear + ReLU
        h = jnp.maximum(linear(h, w4_ref, b4_ref), 0.0)   # Linear + ReLU
        h = jnp.maximum(linear(h, w5_ref, b5_ref), 0.0)   # Linear + ReLU
        h = jnp.tanh(linear(h, w6_ref, b6_ref))           # Linear + Tanh
        # Final out_dim -> 1 projection on the VPU (mul + lane reduce).
        out = jnp.sum(h * w7_ref[...], axis=-1, keepdims=True) + b7_ref[...]  # (bb, 1)
        # Single XLU transpose -> one unmasked lane-dense store per grid step.
        logits_ref[...] = jnp.transpose(out)                                   # (1, bb)

    return kernel


def init_params(key, in_dim, out_dim, dtype=jnp.float32):
    """Deterministic synthetic params. Weights stored as (in, out)."""
    dims = [
        (in_dim, in_dim * 20),
        (in_dim * 20, in_dim * 20),
        (in_dim * 20, in_dim * 20),
        (in_dim * 20, in_dim * 10),
        (in_dim * 10, in_dim),
        (in_dim, out_dim),
        (out_dim, 1),
    ]
    params = []
    for i, (fin, fout) in enumerate(dims):
        kw, kb = jax.random.split(jax.random.fold_in(key, i))
        bound = 1.0 / (fin ** 0.5)
        w = jax.random.uniform(kw, (fin, fout), dtype, minval=-bound, maxval=bound)
        b = jax.random.uniform(kb, (1, fout), dtype, minval=-bound, maxval=bound)
        params.append((w, b))
    return params


def mlp_head_forward(x, params, *, block_b=512, use_bf16=False):
    B, in_dim = x.shape
    n_layers = len(params)

    # Flatten params.  Last weight -> lane-dense (1, out_dim) f32 row (VPU
    # path); the six MXU weights are pre-cast to bf16 in HBM when use_bf16.
    # (They could further be packed into one HBM slab to merge the 14 small
    # DMAs into one; kept separate here for layout clarity.)
    flat = []
    for i, (w, b) in enumerate(params):
        if i == n_layers - 1:
            w = w.reshape(1, -1).astype(jnp.float32)
        elif use_bf16:
            w = w.astype(jnp.bfloat16)
        flat.extend([w, b.astype(jnp.float32)])

    # Batch tiling:
    #  * grid == 1 for small batches (latency bound: fewer steps is better).
    #  * for B > block_b use multiples of 128 (unmasked lane-dense output
    #    stores) and cap the tile so the grid stays >= 2 (v7x dual-TC split).
    Bp8 = _round_up(B, 8)
    if Bp8 <= block_b:
        bb = Bp8
    else:
        half = _round_up(pl.cdiv(Bp8, 2), 128)
        bb = max(128, min(_round_up(block_b, 128), half))
    Bp = _round_up(B, bb)
    if Bp != B:
        x = jnp.pad(x, ((0, Bp - B), (0, 0)))
    grid = (Bp // bb,)

    # Tile only x and the output over the batch grid.  Every weight/bias uses a
    # constant index_map -> DMA'd into VMEM once, never re-fetched per step.
    x_spec = pl.BlockSpec((bb, in_dim), lambda i: (i, 0))
    w_specs = [pl.BlockSpec(a.shape, lambda i: (0, 0)) for a in flat]
    # Lane-dense output slab: (1, Bp), one (1, bb) block per grid step.
    out_spec = pl.BlockSpec((1, bb), lambda i: (0, i))

    flops = 2 * Bp * sum(int(w.shape[0]) * int(w.shape[1]) for w, _ in params)
    bytes_accessed = (
        sum(int(a.size) * a.dtype.itemsize for a in flat)
        + int(x.size) * x.dtype.itemsize
        + Bp * 4
    )
    cost = pl.CostEstimate(
        flops=flops,
        transcendentals=Bp * int(params[5][0].shape[1]),  # tanh only
        bytes_accessed=bytes_accessed,
    )

    logits_row = pl.pallas_call(
        _make_kernel(use_bf16),
        out_shape=jax.ShapeDtypeStruct((1, Bp), jnp.float32),
        grid=grid,
        in_specs=[x_spec] + w_specs,
        out_specs=out_spec,
        compiler_params=pltpu.CompilerParams(
            # Batch grid is embarrassingly parallel: lets v7x shard it across
            # its two TensorCores (no effect on single-TC v5e/v6e).
            dimension_semantics=("parallel",),
        ),
        cost_estimate=cost,
    )(x, *flat)

    logits = logits_row.reshape(Bp, 1)[:B]
    # F.softmax on a (B, 1) tensor (PyTorch picks dim=1 for 2-D input) is
    # identically 1.0 because the module's final layer projects to 1 unit, so
    # probs/abs are produced in the (trivial) XLA wrapper instead of extra
    # masked (B, 1) stores inside the kernel.
    probs = jnp.ones_like(logits)
    return {"probs": probs, "abs_logits": jnp.abs(logits), "logits": logits}


def mlp_head_reference(x, params, *, use_bf16=False):
    """Pure-JAX reference mirroring the kernel's dtype policy."""
    mxu_dtype = jnp.bfloat16 if use_bf16 else jnp.float32
    h = x.astype(jnp.float32)
    n = len(params)
    for i, (w, b) in enumerate(params):
        d = jnp.float32 if i == n - 1 else mxu_dtype  # last layer stays f32
        h = jnp.dot(h.astype(d), w.astype(d),
                    preferred_element_type=jnp.float32) + b
        if i < 5:
            h = jnp.maximum(h, 0.0)
        elif i == 5:
            h = jnp.tanh(h)
    out = h
    return {"probs": jax.nn.softmax(out, axis=-1),
            "abs_logits": jnp.abs(out), "logits": out}


if __name__ == "__main__":
    key = jax.random.PRNGKey(0)
    in_dim, out_dim = 16, 4  # model_conf: input_dimension=16, num_classes=4
    kx, kp, kx2 = jax.random.split(key, 3)
    params = init_params(kp, in_dim, out_dim)

    # Small shape consistent with the module (batch=8 rows of in_dim features).
    x = jax.random.normal(kx, (8, in_dim), jnp.float32)
    out = mlp_head_forward(x, params)
    jax.block_until_ready(out)
    ref = mlp_head_reference(x, params)
    for k in ("probs", "abs_logits", "logits"):
        assert out[k].shape == ref[k].shape, (k, out[k].shape, ref[k].shape)
        assert jnp.allclose(out[k], ref[k], atol=1e-5, rtol=1e-5), k

    # Larger batch: exercises the multi-step batch grid (lane-dense 512-row
    # output tiles, grid of 2 for v7x's two TensorCores, VMEM-resident bf16
    # weights on the MXU).
    xb = jax.random.normal(kx2, (1024, in_dim), jnp.float32)
    out_b = mlp_head_forward(xb, params, block_b=512, use_bf16=True)
    jax.block_until_ready(out_b)
    ref_b = mlp_head_reference(xb, params, use_bf16=True)
    for k in ("probs", "abs_logits", "logits"):
        assert out_b[k].shape == ref_b[k].shape, (k, out_b[k].shape, ref_b[k].shape)
        assert jnp.allclose(out_b[k], ref_b[k], atol=2e-2, rtol=2e-2), k

    print("KERNEL_OK")
</pallas_src>

<mosaic_0001>
module attributes {stable_mosaic.version = 11 : i64} {
  func.func @kernel(%arg0: i32, %arg1: memref<8x16xf32, #tpu.memory_space<vmem>>, %arg2: memref<16x320xf32, #tpu.memory_space<vmem>>, %arg3: memref<1x320xf32, #tpu.memory_space<vmem>>, %arg4: memref<320x320xf32, #tpu.memory_space<vmem>>, %arg5: memref<1x320xf32, #tpu.memory_space<vmem>>, %arg6: memref<320x320xf32, #tpu.memory_space<vmem>>, %arg7: memref<1x320xf32, #tpu.memory_space<vmem>>, %arg8: memref<320x160xf32, #tpu.memory_space<vmem>>, %arg9: memref<1x160xf32, #tpu.memory_space<vmem>>, %arg10: memref<160x16xf32, #tpu.memory_space<vmem>>, %arg11: memref<1x16xf32, #tpu.memory_space<vmem>>, %arg12: memref<16x4xf32, #tpu.memory_space<vmem>>, %arg13: memref<1x4xf32, #tpu.memory_space<vmem>>, %arg14: memref<1x4xf32, #tpu.memory_space<vmem>>, %arg15: memref<1x1xf32, #tpu.memory_space<vmem>>, %arg16: memref<1x8xf32, #tpu.memory_space<vmem>>) attributes {dimension_semantics = [#tpu.dimension_semantics<parallel>], iteration_bounds = array<i64: 1>, scalar_prefetch = 0 : i64, scratch_operands = 0 : i64, tpu.core_type = #tpu.core_type<tc>, window_params = [{transform_indices = @transform_0, window_bounds = array<i64: 8, 16>}, {pipeline_mode = #tpu.pipeline_mode<synchronous>, transform_indices = @transform_1, window_bounds = array<i64: 16, 320>}, {pipeline_mode = #tpu.pipeline_mode<synchronous>, transform_indices = @transform_2, window_bounds = array<i64: 1, 320>}, {pipeline_mode = #tpu.pipeline_mode<synchronous>, transform_indices = @transform_3, window_bounds = array<i64: 320, 320>}, {pipeline_mode = #tpu.pipeline_mode<synchronous>, transform_indices = @transform_4, window_bounds = array<i64: 1, 320>}, {pipeline_mode = #tpu.pipeline_mode<synchronous>, transform_indices = @transform_5, window_bounds = array<i64: 320, 320>}, {pipeline_mode = #tpu.pipeline_mode<synchronous>, transform_indices = @transform_6, window_bounds = array<i64: 1, 320>}, {pipeline_mode = #tpu.pipeline_mode<synchronous>, transform_indices = @transform_7, window_bounds = array<i64: 320, 160>}, {pipeline_mode = #tpu.pipeline_mode<synchronous>, transform_indices = @transform_8, window_bounds = array<i64: 1, 160>}, {pipeline_mode = #tpu.pipeline_mode<synchronous>, transform_indices = @transform_9, window_bounds = array<i64: 160, 16>}, {pipeline_mode = #tpu.pipeline_mode<synchronous>, transform_indices = @transform_10, window_bounds = array<i64: 1, 16>}, {pipeline_mode = #tpu.pipeline_mode<synchronous>, transform_indices = @transform_11, window_bounds = array<i64: 16, 4>}, {pipeline_mode = #tpu.pipeline_mode<synchronous>, transform_indices = @transform_12, window_bounds = array<i64: 1, 4>}, {pipeline_mode = #tpu.pipeline_mode<synchronous>, transform_indices = @transform_13, window_bounds = array<i64: 1, 4>}, {pipeline_mode = #tpu.pipeline_mode<synchronous>, transform_indices = @transform_14, window_bounds = array<i64: 1, 1>}, {transform_indices = @transform_15, window_bounds = array<i64: 1, 8>}]} {
    %c0 = arith.constant 0 : index
    %c0_0 = arith.constant 0 : index
    %0 = vector.load %arg1[%c0, %c0_0] : memref<8x16xf32, #tpu.memory_space<vmem>>, vector<8x16xf32>
    %c0_1 = arith.constant 0 : index
    %c0_2 = arith.constant 0 : index
    %1 = vector.load %arg2[%c0_1, %c0_2] : memref<16x320xf32, #tpu.memory_space<vmem>>, vector<16x320xf32>
    %cst = arith.constant dense<0.000000e+00> : vector<8x320xf32>
    %2 = tpu.matmul %0, %1, %cst {dimension_numbers = #tpu.dot_dimension_numbers<[1], [0], [0], [1], [0, 0, 1, 1], [], []>} : vector<8x16xf32>, vector<16x320xf32>, vector<8x320xf32> -> vector<8x320xf32>
    %c0_3 = arith.constant 0 : index
    %c0_4 = arith.constant 0 : index
    %3 = vector.load %arg3[%c0_3, %c0_4] : memref<1x320xf32, #tpu.memory_space<vmem>>, vector<1x320xf32>
    %4 = vector.broadcast %3 : vector<1x320xf32> to vector<8x320xf32>
    %5 = arith.addf %2, %4 : vector<8x320xf32>
    %cst_5 = arith.constant 0.000000e+00 : f32
    %6 = vector.broadcast %cst_5 : f32 to vector<8x320xf32>
    %7 = arith.maximumf %5, %6 : vector<8x320xf32>
    %c0_6 = arith.constant 0 : index
    %c0_7 = arith.constant 0 : index
    %8 = vector.load %arg4[%c0_6, %c0_7] : memref<320x320xf32, #tpu.memory_space<vmem>>, vector<320x320xf32>
    %cst_8 = arith.constant dense<0.000000e+00> : vector<8x320xf32>
    %9 = tpu.matmul %7, %8, %cst_8 {dimension_numbers = #tpu.dot_dimension_numbers<[1], [0], [0], [1], [0, 0, 1, 1], [], []>} : vector<8x320xf32>, vector<320x320xf32>, vector<8x320xf32> -> vector<8x320xf32>
    %c0_9 = arith.constant 0 : index
    %c0_10 = arith.constant 0 : index
    %10 = vector.load %arg5[%c0_9, %c0_10] : memref<1x320xf32, #tpu.memory_space<vmem>>, vector<1x320xf32>
    %11 = vector.broadcast %10 : vector<1x320xf32> to vector<8x320xf32>
    %12 = arith.addf %9, %11 : vector<8x320xf32>
    %cst_11 = arith.constant 0.000000e+00 : f32
    %13 = vector.broadcast %cst_11 : f32 to vector<8x320xf32>
    %14 = arith.maximumf %12, %13 : vector<8x320xf32>
    %c0_12 = arith.constant 0 : index
    %c0_13 = arith.constant 0 : index
    %15 = vector.load %arg6[%c0_12, %c0_13] : memref<320x320xf32, #tpu.memory_space<vmem>>, vector<320x320xf32>
    %cst_14 = arith.constant dense<0.000000e+00> : vector<8x320xf32>
    %16 = tpu.matmul %14, %15, %cst_14 {dimension_numbers = #tpu.dot_dimension_numbers<[1], [0], [0], [1], [0, 0, 1, 1], [], []>} : vector<8x320xf32>, vector<320x320xf32>, vector<8x320xf32> -> vector<8x320xf32>
    %c0_15 = arith.constant 0 : index
    %c0_16 = arith.constant 0 : index
    %17 = vector.load %arg7[%c0_15, %c0_16] : memref<1x320xf32, #tpu.memory_space<vmem>>, vector<1x320xf32>
    %18 = vector.broadcast %17 : vector<1x320xf32> to vector<8x320xf32>
    %19 = arith.addf %16, %18 : vector<8x320xf32>
    %cst_17 = arith.constant 0.000000e+00 : f32
    %20 = vector.broadcast %cst_17 : f32 to vector<8x320xf32>
    %21 = arith.maximumf %19, %20 : vector<8x320xf32>
    %c0_18 = arith.constant 0 : index
    %c0_19 = arith.constant 0 : index
    %22 = vector.load %arg8[%c0_18, %c0_19] : memref<320x160xf32, #tpu.memory_space<vmem>>, vector<320x160xf32>
    %cst_20 = arith.constant dense<0.000000e+00> : vector<8x160xf32>
    %23 = tpu.matmul %21, %22, %cst_20 {dimension_numbers = #tpu.dot_dimension_numbers<[1], [0], [0], [1], [0, 0, 1, 1], [], []>} : vector<8x320xf32>, vector<320x160xf32>, vector<8x160xf32> -> vector<8x160xf32>
    %c0_21 = arith.constant 0 : index
    %c0_22 = arith.constant 0 : index
    %24 = vector.load %arg9[%c0_21, %c0_22] : memref<1x160xf32, #tpu.memory_space<vmem>>, vector<1x160xf32>
    %25 = vector.broadcast %24 : vector<1x160xf32> to vector<8x160xf32>
    %26 = arith.addf %23, %25 : vector<8x160xf32>
    %cst_23 = arith.constant 0.000000e+00 : f32
    %27 = vector.broadcast %cst_23 : f32 to vector<8x160xf32>
    %28 = arith.maximumf %26, %27 : vector<8x160xf32>
    %c0_24 = arith.constant 0 : index
    %c0_25 = arith.constant 0 : index
    %29 = vector.load %arg10[%c0_24, %c0_25] : memref<160x16xf32, #tpu.memory_space<vmem>>, vector<160x16xf32>
    %cst_26 = arith.constant dense<0.000000e+00> : vector<8x16xf32>
    %30 = tpu.matmul %28, %29, %cst_26 {dimension_numbers = #tpu.dot_dimension_numbers<[1], [0], [0], [1], [0, 0, 1, 1], [], []>} : vector<8x160xf32>, vector<160x16xf32>, vector<8x16xf32> -> vector<8x16xf32>
    %c0_27 = arith.constant 0 : index
    %c0_28 = arith.constant 0 : index
    %31 = vector.load %arg11[%c0_27, %c0_28] : memref<1x16xf32, #tpu.memory_space<vmem>>, vector<1x16xf32>
    %32 = vector.broadcast %31 : vector<1x16xf32> to vector<8x16xf32>
    %33 = arith.addf %30, %32 : vector<8x16xf32>
    %cst_29 = arith.constant 0.000000e+00 : f32
    %34 = vector.broadcast %cst_29 : f32 to vector<8x16xf32>
    %35 = arith.maximumf %33, %34 : vector<8x16xf32>
    %c0_30 = arith.constant 0 : index
    %c0_31 = arith.constant 0 : index
    %36 = vector.load %arg12[%c0_30, %c0_31] : memref<16x4xf32, #tpu.memory_space<vmem>>, vector<16x4xf32>
    %cst_32 = arith.constant dense<0.000000e+00> : vector<8x4xf32>
    %37 = tpu.matmul %35, %36, %cst_32 {dimension_numbers = #tpu.dot_dimension_numbers<[1], [0], [0], [1], [0, 0, 1, 1], [], []>} : vector<8x16xf32>, vector<16x4xf32>, vector<8x4xf32> -> vector<8x4xf32>
    %c0_33 = arith.constant 0 : index
    %c0_34 = arith.constant 0 : index
    %38 = vector.load %arg13[%c0_33, %c0_34] : memref<1x4xf32, #tpu.memory_space<vmem>>, vector<1x4xf32>
    %39 = vector.broadcast %38 : vector<1x4xf32> to vector<8x4xf32>
    %40 = arith.addf %37, %39 : vector<8x4xf32>
    %41 = math.tanh %40 : vector<8x4xf32>
    %c0_35 = arith.constant 0 : index
    %c0_36 = arith.constant 0 : index
    %42 = vector.load %arg14[%c0_35, %c0_36] : memref<1x4xf32, #tpu.memory_space<vmem>>, vector<1x4xf32>
    %43 = vector.broadcast %42 : vector<1x4xf32> to vector<8x4xf32>
    %44 = arith.mulf %41, %43 : vector<8x4xf32>
    %cst_37 = arith.constant dense<0.000000e+00> : vector<8xf32>
    %45 = vector.multi_reduction <add>, %44, %cst_37 [1] : vector<8x4xf32> to vector<8xf32>
    %46 = vector.shape_cast %45 : vector<8xf32> to vector<8x1xf32>
    %c0_38 = arith.constant 0 : index
    %c0_39 = arith.constant 0 : index
    %47 = vector.load %arg15[%c0_38, %c0_39] : memref<1x1xf32, #tpu.memory_space<vmem>>, vector<1x1xf32>
    %48 = vector.broadcast %47 : vector<1x1xf32> to vector<8x1xf32>
    %49 = arith.addf %46, %48 : vector<8x1xf32>
    %50 = tpu.transpose %49, [1, 0] : vector<8x1xf32> -> vector<1x8xf32>
    %c0_40 = arith.constant 0 : index
    %c0_41 = arith.constant 0 : index
    %51 = vector.load %arg16[%c0_40, %c0_41] : memref<1x8xf32, #tpu.memory_space<vmem>>, vector<1x8xf32>
    tpu.vector_store %arg16[%c0_40, %c0_41], %50 {strides = array<i32>} : memref<1x8xf32, #tpu.memory_space<vmem>>, vector<1x8xf32>,
    return
  }
  func.func @transform_0(%arg0: i32) -> (i32, i32) {
    %c0_i32 = arith.constant 0 : i32
    %c0_i32_0 = arith.constant 0 : i32
    return %arg0, %c0_i32 : i32, i32
  }
  func.func @transform_1(%arg0: i32) -> (i32, i32) {
    %c0_i32 = arith.constant 0 : i32
    %c0_i32_0 = arith.constant 0 : i32
    %c0_i32_1 = arith.constant 0 : i32
    return %c0_i32, %c0_i32_0 : i32, i32
  }
  func.func @transform_2(%arg0: i32) -> (i32, i32) {
    %c0_i32 = arith.constant 0 : i32
    %c0_i32_0 = arith.constant 0 : i32
    %c0_i32_1 = arith.constant 0 : i32
    return %c0_i32, %c0_i32_0 : i32, i32
  }
  func.func @transform_3(%arg0: i32) -> (i32, i32) {
    %c0_i32 = arith.constant 0 : i32
    %c0_i32_0 = arith.constant 0 : i32
    %c0_i32_1 = arith.constant 0 : i32
    return %c0_i32, %c0_i32_0 : i32, i32
  }
  func.func @transform_4(%arg0: i32) -> (i32, i32) {
    %c0_i32 = arith.constant 0 : i32
    %c0_i32_0 = arith.constant 0 : i32
    %c0_i32_1 = arith.constant 0 : i32
    return %c0_i32, %c0_i32_0 : i32, i32
  }
  func.func @transform_5(%arg0: i32) -> (i32, i32) {
    %c0_i32 = arith.constant 0 : i32
    %c0_i32_0 = arith.constant 0 : i32
    %c0_i32_1 = arith.constant 0 : i32
    return %c0_i32, %c0_i32_0 : i32, i32
  }
  func.func @transform_6(%arg0: i32) -> (i32, i32) {
    %c0_i32 = arith.constant 0 : i32
    %c0_i32_0 = arith.constant 0 : i32
    %c0_i32_1 = arith.constant 0 : i32
    return %c0_i32, %c0_i32_0 : i32, i32
  }
  func.func @transform_7(%arg0: i32) -> (i32, i32) {
    %c0_i32 = arith.constant 0 : i32
    %c0_i32_0 = arith.constant 0 : i32
    %c0_i32_1 = arith.constant 0 : i32
    return %c0_i32, %c0_i32_0 : i32, i32
  }
  func.func @transform_8(%arg0: i32) -> (i32, i32) {
    %c0_i32 = arith.constant 0 : i32
    %c0_i32_0 = arith.constant 0 : i32
    %c0_i32_1 = arith.constant 0 : i32
    return %c0_i32, %c0_i32_0 : i32, i32
  }
  func.func @transform_9(%arg0: i32) -> (i32, i32) {
    %c0_i32 = arith.constant 0 : i32
    %c0_i32_0 = arith.constant 0 : i32
    %c0_i32_1 = arith.constant 0 : i32
    return %c0_i32, %c0_i32_0 : i32, i32
  }
  func.func @transform_10(%arg0: i32) -> (i32, i32) {
    %c0_i32 = arith.constant 0 : i32
    %c0_i32_0 = arith.constant 0 : i32
    %c0_i32_1 = arith.constant 0 : i32
    return %c0_i32, %c0_i32_0 : i32, i32
  }
  func.func @transform_11(%arg0: i32) -> (i32, i32) {
    %c0_i32 = arith.constant 0 : i32
    %c0_i32_0 = arith.constant 0 : i32
    %c0_i32_1 = arith.constant 0 : i32
    return %c0_i32, %c0_i32_0 : i32, i32
  }
  func.func @transform_12(%arg0: i32) -> (i32, i32) {
    %c0_i32 = arith.constant 0 : i32
    %c0_i32_0 = arith.constant 0 : i32
    %c0_i32_1 = arith.constant 0 : i32
    return %c0_i32, %c0_i32_0 : i32, i32
  }
  func.func @transform_13(%arg0: i32) -> (i32, i32) {
    %c0_i32 = arith.constant 0 : i32
    %c0_i32_0 = arith.constant 0 : i32
    %c0_i32_1 = arith.constant 0 : i32
    return %c0_i32, %c0_i32_0 : i32, i32
  }
  func.func @transform_14(%arg0: i32) -> (i32, i32) {
    %c0_i32 = arith.constant 0 : i32
    %c0_i32_0 = arith.constant 0 : i32
    %c0_i32_1 = arith.constant 0 : i32
    return %c0_i32, %c0_i32_0 : i32, i32
  }
  func.func @transform_15(%arg0: i32) -> (i32, i32) {
    %c0_i32 = arith.constant 0 : i32
    %c0_i32_0 = arith.constant 0 : i32
    return %c0_i32, %arg0 : i32, i32
  }
}

</mosaic_0001>

<llo_original>
// kernel: tpu_custom_call.1
$region0: #{tpu_custom_call.1}
  #allocation0 [shape = 'u32[]', space=smem, size = 0x4, offset = 0x4, fixed_abs, tag = 'smem constant byte address 0x4 - core index']
  #allocation1 [shape = 'u32[144,128]{1,0:T(1,128)}', space=vmem, size = 0x12000, scoped, tag = 'internal scratch']
  #allocation2 [shape = 'f32[1,1]{1,0:T(1,128)S(1)}', space=vmem, size = 0x200, scoped, tag = 'scoped memory for tpu_custom_call.1']
  %s0 = inlined_call_operand.vmem [shape: f32[8,16], index: 0, kind: input, shape index: {}]
  %s1 = inlined_call_operand.vmem [shape: f32[16,320], index: 1, kind: input, shape index: {}]
  %s2 = inlined_call_operand.vmem [shape: f32[1,320], index: 2, kind: input, shape index: {}]
  %s3 = inlined_call_operand.vmem [shape: f32[320,320], index: 3, kind: input, shape index: {}]
  %s4 = inlined_call_operand.vmem [shape: f32[1,320], index: 4, kind: input, shape index: {}]
  %s5 = inlined_call_operand.hbm [shape: f32[320,320], index: 5, kind: input, shape index: {}]
  %s6 = inlined_call_operand.vmem [shape: f32[1,320], index: 6, kind: input, shape index: {}]
  %s7 = inlined_call_operand.vmem [shape: f32[320,160], index: 7, kind: input, shape index: {}]
  %s8 = inlined_call_operand.vmem [shape: f32[1,160], index: 8, kind: input, shape index: {}]
  %s9 = inlined_call_operand.vmem [shape: f32[160,16], index: 9, kind: input, shape index: {}]
  %s10 = inlined_call_operand.vmem [shape: f32[1,16], index: 10, kind: input, shape index: {}]
  %s11 = inlined_call_operand.vmem [shape: f32[16,4], index: 11, kind: input, shape index: {}]
  %s12 = inlined_call_operand.vmem [shape: f32[1,4], index: 12, kind: input, shape index: {}]
  %s13 = inlined_call_operand.vmem [shape: f32[1,4], index: 13, kind: input, shape index: {}]
  %s14 = inlined_call_operand.<no memory space> [shape: f32[1,1], index: 14, kind: input, shape index: {}]
  %s15 = inlined_call_operand.hbm [shape: f32[1,8], index: 15, kind: output, shape index: {}]
  %s16 = sld [smem:[#allocation0]]
  $region74: #{tpu_custom_call.1} parent=0
    _
  %s18 = ssub.s32 1, %s16
  %s19 = scalar_select 0, %s18, %s16
  %v20 = vstv %s14
  %21 = vst [vmem:[#allocation2] sm:$0x1] %v20
  $region1: #{tpu_custom_call.1} parent=0
    #allocation3 [shape = 'u8[491520]{0}', space=vmem, size = 0x78000, scoped, tag = 'input window, operand 5, single buffered']
    #allocation4 [shape = 's32[1]{0}', space=sflag, size = 0x4, scoped, tag = 'scoped memory for tpu_custom_call.1']
    #allocation5 [shape = 's32[1]{0}', space=sflag, size = 0x4, scoped, tag = 'scoped memory for tpu_custom_call.1']
    #allocation6 [shape = 'u8[512]{0}', space=vmem, size = 0x400, scoped, tag = 'output window, operand 0, single buffered']
    %22 = vsyncpa [#allocation4], 0
    %23 = vsyncpa [#allocation5], 0
    // Predicated region
    $region2: #{tpu_custom_call.1} parent=1 // pred_check
      _
    $region3: #{tpu_custom_call.1} parent=1 // pred_check_branch
      %25 = sbr.rel (0) target = $region5
    $region4: #{tpu_custom_call.1} parent=1 // pred_region
      _
    $region5: #{tpu_custom_call.1} parent=1 // pred_fallthru
      _
    // Predicated region
    $region6: #{tpu_custom_call.1} parent=1 // pred_check
      _
    $region7: #{tpu_custom_call.1} parent=1 // pred_check_branch
      %27 = sbr.rel (0) target = $region9
    $region8: #{tpu_custom_call.1} parent=1 // pred_region
      _
    $region9: #{tpu_custom_call.1} parent=1 // pred_fallthru
      _
    // Predicated region
    $region10: #{tpu_custom_call.1} parent=1 // pred_check
      _
    $region11: #{tpu_custom_call.1} parent=1 // pred_check_branch
      %29 = sbr.rel (0) target = $region13
    $region12: #{tpu_custom_call.1} parent=1 // pred_region
      _
    $region13: #{tpu_custom_call.1} parent=1 // pred_fallthru
      _
    // Predicated region
    $region14: #{tpu_custom_call.1} parent=1 // pred_check
      _
    $region15: #{tpu_custom_call.1} parent=1 // pred_check_branch
      %31 = sbr.rel (0) target = $region17
    $region16: #{tpu_custom_call.1} parent=1 // pred_region
      _
    $region17: #{tpu_custom_call.1} parent=1 // pred_fallthru
      _
    // Predicated region
    $region18: #{tpu_custom_call.1} parent=1 // pred_check
      _
    $region19: #{tpu_custom_call.1} parent=1 // pred_check_branch
      %33 = sbr.rel (0) target = $region21
    $region20: #{tpu_custom_call.1} parent=1 // pred_region
      _
    $region21: #{tpu_custom_call.1} parent=1 // pred_fallthru
      _
    // Predicated region
    $region22: #{tpu_custom_call.1} parent=1 // pred_check
      _
    $region23: #{tpu_custom_call.1} parent=1 // pred_check_branch
      %35 = sbr.rel (0) target = $region25
    $region24: #{tpu_custom_call.1} parent=1 // pred_region
      %s37 = ssub.s32 15360, 15360
      %38 = vsyncadd [#allocation4], %s37
      %s39 = sshll.u32 [#allocation3], 4
      %s40 = int_to_ptr.vmem [resolvable:$true] %s39
      %45 = dma.hbm_to_vmem [thread:$0]  %s5, 15360, %s40, [#allocation4], 384, 384, 24
    $region25: #{tpu_custom_call.1} parent=1 // pred_fallthru
      _
    // Predicated region
    $region26: #{tpu_custom_call.1} parent=1 // pred_check
      _
    $region27: #{tpu_custom_call.1} parent=1 // pred_check_branch
      %47 = sbr.rel (0) target = $region29
    $region28: #{tpu_custom_call.1} parent=1 // pred_region
      _
    $region29: #{tpu_custom_call.1} parent=1 // pred_fallthru
      _
    // Predicated region
    $region30: #{tpu_custom_call.1} parent=1 // pred_check
      _
    $region31: #{tpu_custom_call.1} parent=1 // pred_check_branch
      %49 = sbr.rel (0) target = $region33
    $region32: #{tpu_custom_call.1} parent=1 // pred_region
      _
    $region33: #{tpu_custom_call.1} parent=1 // pred_fallthru
      _
    // Predicated region
    $region34: #{tpu_custom_call.1} parent=1 // pred_check
      _
    $region35: #{tpu_custom_call.1} parent=1 // pred_check_branch
      %51 = sbr.rel (0) target = $region37
    $region36: #{tpu_custom_call.1} parent=1 // pred_region
      _
    $region37: #{tpu_custom_call.1} parent=1 // pred_fallthru
      _
    // Predicated region
    $region38: #{tpu_custom_call.1} parent=1 // pred_check
      _
    $region39: #{tpu_custom_call.1} parent=1 // pred_check_branch
      %53 = sbr.rel (0) target = $region41
    $region40: #{tpu_custom_call.1} parent=1 // pred_region
      _
    $region41: #{tpu_custom_call.1} parent=1 // pred_fallthru
      _
    // Predicated region
    $region42: #{tpu_custom_call.1} parent=1 // pred_check
      _
    $region43: #{tpu_custom_call.1} parent=1 // pred_check_branch
      %55 = sbr.rel (0) target = $region45
    $region44: #{tpu_custom_call.1} parent=1 // pred_region
      _
    $region45: #{tpu_custom_call.1} parent=1 // pred_fallthru
      _
    // Predicated region
    $region46: #{tpu_custom_call.1} parent=1 // pred_check
      _
    $region47: #{tpu_custom_call.1} parent=1 // pred_check_branch
      %57 = sbr.rel (0) target = $region49
    $region48: #{tpu_custom_call.1} parent=1 // pred_region
      _
    $region49: #{tpu_custom_call.1} parent=1 // pred_fallthru
      _
    // Predicated region
    $region50: #{tpu_custom_call.1} parent=1 // pred_check
      _
    $region51: #{tpu_custom_call.1} parent=1 // pred_check_branch
      %59 = sbr.rel (0) target = $region53
    $region52: #{tpu_custom_call.1} parent=1 // pred_region
      _
    $region53: #{tpu_custom_call.1} parent=1 // pred_fallthru
      _
    // Predicated region
    $region54: #{tpu_custom_call.1} parent=1 // pred_check
      _
    $region55: #{tpu_custom_call.1} parent=1 // pred_check_branch
      %61 = sbr.rel (0) target = $region57
    $region56: #{tpu_custom_call.1} parent=1 // pred_region
      _
    $region57: #{tpu_custom_call.1} parent=1 // pred_fallthru
      _
    // Predicated region
    $region58: #{tpu_custom_call.1} parent=1 // pred_check
      _
    $region59: #{tpu_custom_call.1} parent=1 // pred_check_branch
      %63 = sbr.rel (0) target = $region61
    $region60: #{tpu_custom_call.1} parent=1 // pred_region
      _
    $region61: #{tpu_custom_call.1} parent=1 // pred_fallthru
      _
    // Predicated region
    $region62: #{tpu_custom_call.1} parent=1 // pred_check
      _
    $region63: #{tpu_custom_call.1} parent=1 // pred_check_branch
      %65 = sbr.rel (0) target = $region65
    $region64: #{tpu_custom_call.1} parent=1 // pred_region
      %66 = dma.done [#allocation4], 15360
    $region65: #{tpu_custom_call.1} parent=1 // pred_fallthru
      _
    %v67 = vld [vmem:[%s0] sm:$0xff]
    %v68 = vld [vmem:[%s1] sm:$0xff]
    %v69 = vld [vmem:[%s1 + $0x8] sm:$0xff]
    %v70 = vld [vmem:[%s1 + $0x10] sm:$0xff]
    %v71 = vld [vmem:[%s1 + $0x18] sm:$0xff]
    %v72 = vld [vmem:[%s1 + $0x20] sm:$0xff]
    %v73 = vld [vmem:[%s1 + $0x28] sm:$0xff]
    %v74 = vld [vmem:[%s2] sm:$0x7]
    %v76 = vlaneseq
    %v77 = vshrl.u32 %v76, 7
    %v78 = vsub.s32 0, %v77
    %v79 = vrot.slane %v74, %v78
    %v80 = vlaneseq
    %v81 = vshrl.u32 %v80, 7
    %v82 = vsub.s32 1, %v81
    %v83 = vrot.slane %v74, %v82
    %v84 = vlaneseq
    %v85 = vshrl.u32 %v84, 7
    %v86 = vsub.s32 2, %v85
    %v87 = vrot.slane %v74, %v86
    %vm91 = vcmask 130048
    %v93 = vsel %vm91, %v67, 0
    %95 = vmatprep.subr.mxu0 %v69
    %96 = vmatpush1.msra.mxu0 %v68
    %97 = vmatprep.subr.mxu0 %v72
    %98 = vmatpush1.msra.mxu0 %v71
    %99 = vmatprep.subr.mxu0 0.0
    %100 = vmatpush1.msra.mxu0 0.0
    %101 = vmatprep.subr.mxu0 0.0
    %102 = vmatpush1.msra.mxu0 0.0
    %103 = vmatprep.subr.mxu0 0.0
    %104 = vmatpush1.msra.mxu0 0.0
    %105 = vmatprep.subr.mxu0 0.0
    %106 = vmatpush1.msra.mxu0 0.0
    %107 = vmatprep.subr.mxu0 0.0
    %108 = vmatpush1.msra.mxu0 0.0
    %109 = vmatprep.subr.mxu0 0.0
    %110 = vmatpush1.msra.mxu0 0.0
    %111 = vmatprep.subr.mxu0 0.0
    %112 = vmatpush1.msra.mxu0 0.0
    %113 = vmatprep.subr.mxu0 0.0
    %114 = vmatpush1.msra.mxu0 0.0
    %115 = vmatprep.subr.mxu0 0.0
    %116 = vmatpush1.msra.mxu0 0.0
    %117 = vmatprep.subr.mxu0 0.0
    %118 = vmatpush1.msra.mxu0 0.0
    %119 = vmatprep.subr.mxu0 0.0
    %120 = vmatpush1.msra.mxu0 0.0
    %121 = vmatprep.subr.mxu0 0.0
    %122 = vmatpush1.msra.mxu0 0.0
    %123 = vmatprep.subr.mxu0 0.0
    %124 = vmatpush1.msra.mxu0 0.0
    %125 = vmatprep.subr.mxu0 0.0
    %126 = vmatpush1.msra.mxu0 0.0
    %127 = vmatprep.subr.mxu0 0.0
    %128 = vmatpush1.msra.mxu0 0.0
    %129 = vmatprep.subr.mxu0 0.0
    %130 = vmatpush1.msra.mxu0 0.0
    %131 = vmatprep.subr.mxu0 0.0
    %132 = vmatpush1.msra.mxu0 0.0
    %133 = vmatprep.subr.mxu0 0.0
    %134 = vmatpush1.msra.mxu0 0.0
    %135 = vmatprep.subr.mxu0 0.0
    %136 = vmatpush1.msra.mxu0 0.0
    %137 = vmatprep.subr.mxu0 0.0
    %138 = vmatpush1.msra.mxu0 0.0
    %139 = vmatprep.subr.mxu0 0.0
    %140 = vmatpush1.msra.mxu0 0.0
    %141 = vmatprep.subr.mxu0 0.0
    %142 = vmatpush1.msra.mxu0 0.0
    %143 = vmatprep.subr.mxu0 0.0
    %144 = vmatpush1.msra.mxu0 0.0
    %145 = vmatprep.subr.mxu0 0.0
    %146 = vmatpush1.msra.mxu0 0.0
    %147 = vmatprep.subr.mxu0 0.0
    %148 = vmatpush1.msra.mxu0 0.0
    %149 = vmatprep.subr.mxu0 0.0
    %150 = vmatpush1.msra.mxu0 0.0
    %151 = vmatprep.subr.mxu0 0.0
    %152 = vmatpush1.msra.mxu0 0.0
    %153 = vmatprep.subr.mxu0 0.0
    %154 = vmatpush1.msra.mxu0 0.0
    %155 = vmatprep.subr.mxu0 0.0
    %156 = vmatpush1.msra.mxu0 0.0
    %157 = vmatprep.subr.mxu0 0.0
    %158 = vmatpush1.msra.mxu0 0.0
    %159 = vmatprep.mubr.f32.mxu0 0.0
    %160 = vmatmul.mubr.f32.gmra.mrb[0].mxu0 %v93
    %v161 = vpop.f32.mrb[0].mxu0
    %v162 = vadd.f32 %v79, %v161
    %v163 = vpop.f32.mrb[0].mxu0
    %v164 = vadd.f32 %v83, %v163
    %165 = vdwg.mxu0
    %166 = vmatprep.subr.mxu0 0.0
    %167 = vmatpush1.msra.mxu0 %v70
    %168 = vmatprep.subr.mxu0 0.0
    %169 = vmatpush1.msra.mxu0 %v73
    %170 = vmatprep.subr.mxu0 0.0
    %171 = vmatpush1.msra.mxu0 0.0
    %172 = vmatprep.subr.mxu0 0.0
    %173 = vmatpush1.msra.mxu0 0.0
    %174 = vmatprep.subr.mxu0 0.0
    %175 = vmatpush1.msra.mxu0 0.0
    %176 = vmatprep.subr.mxu0 0.0
    %177 = vmatpush1.msra.mxu0 0.0
    %178 = vmatprep.subr.mxu0 0.0
    %179 = vmatpush1.msra.mxu0 0.0
    %180 = vmatprep.subr.mxu0 0.0
    %181 = vmatpush1.msra.mxu0 0.0
    %182 = vmatprep.subr.mxu0 0.0
    %183 = vmatpush1.msra.mxu0 0.0
    %184 = vmatprep.subr.mxu0 0.0
    %185 = vmatpush1.msra.mxu0 0.0
    %186 = vmatprep.subr.mxu0 0.0
    %187 = vmatpush1.msra.mxu0 0.0
    %188 = vmatprep.subr.mxu0 0.0
    %189 = vmatpush1.msra.mxu0 0.0
    %190 = vmatprep.subr.mxu0 0.0
    %191 = vmatpush1.msra.mxu0 0.0
    %192 = vmatprep.subr.mxu0 0.0
    %193 = vmatpush1.msra.mxu0 0.0
    %194 = vmatprep.subr.mxu0 0.0
    %195 = vmatpush1.msra.mxu0 0.0
    %196 = vmatprep.subr.mxu0 0.0
    %197 = vmatpush1.msra.mxu0 0.0
    %198 = vmatprep.subr.mxu0 0.0
    %199 = vmatpush1.msra.mxu0 0.0
    %200 = vmatprep.subr.mxu0 0.0
    %201 = vmatpush1.msra.mxu0 0.0
    %202 = vmatprep.subr.mxu0 0.0
    %203 = vmatpush1.msra.mxu0 0.0
    %204 = vmatprep.subr.mxu0 0.0
    %205 = vmatpush1.msra.mxu0 0.0
    %206 = vmatprep.subr.mxu0 0.0
    %207 = vmatpush1.msra.mxu0 0.0
    %208 = vmatprep.subr.mxu0 0.0
    %209 = vmatpush1.msra.mxu0 0.0
    %210 = vmatprep.subr.mxu0 0.0
    %211 = vmatpush1.msra.mxu0 0.0
    %212 = vmatprep.subr.mxu0 0.0
    %213 = vmatpush1.msra.mxu0 0.0
    %214 = vmatprep.subr.mxu0 0.0
    %215 = vmatpush1.msra.mxu0 0.0
    %216 = vmatprep.subr.mxu0 0.0
    %217 = vmatpush1.msra.mxu0 0.0
    %218 = vmatprep.subr.mxu0 0.0
    %219 = vmatpush1.msra.mxu0 0.0
    %220 = vmatprep.subr.mxu0 0.0
    %221 = vmatpush1.msra.mxu0 0.0
    %222 = vmatprep.subr.mxu0 0.0
    %223 = vmatpush1.msra.mxu0 0.0
    %224 = vmatprep.subr.mxu0 0.0
    %225 = vmatpush1.msra.mxu0 0.0
    %226 = vmatprep.subr.mxu0 0.0
    %227 = vmatpush1.msra.mxu0 0.0
    %228 = vmatprep.subr.mxu0 0.0
    %229 = vmatpush1.msra.mxu0 0.0
    %230 = vmatprep.mubr.f32.mxu0 0.0
    %231 = vmatmul.mubr.f32.gmra.mrb[0].mxu0 %v93
    %v232 = vpop.f32.mrb[0].mxu0
    %v233 = vadd.f32 %v87, %v232
    %v234 = vpop.f32.mrb[0].mxu0
    %235 = vdwg.mxu0
    %v236 = vmax.f32 %v162, 0.0
    %v237 = vmax.f32 %v164, 0.0
    %v238 = vmax.f32 %v233, 0.0
    %v239 = vld [vmem:[%s3] sm:$0xff]
    %v240 = vld [vmem:[%s3 + $0x8] sm:$0xff]
    %v241 = vld [vmem:[%s3 + $0x10] sm:$0xff]
    %v242 = vld [vmem:[%s3 + $0x18] sm:$0xff]
    %v243 = vld [vmem:[%s3 + $0x20] sm:$0xff]
    %v244 = vld [vmem:[%s3 + $0x28] sm:$0xff]
    %v245 = vld [vmem:[%s3 + $0x30] sm:$0xff]
    %v246 = vld [vmem:[%s3 + $0x38] sm:$0xff]
    %v247 = vld [vmem:[%s3 + $0x40] sm:$0xff]
    %v248 = vld [vmem:[%s3 + $0x48] sm:$0xff]
    %v249 = vld [vmem:[%s3 + $0x50] sm:$0xff]
    %v250 = vld [vmem:[%s3 + $0x58] sm:$0xff]
    %v251 = vld [vmem:[%s3 + $0x60] sm:$0xff]
    %v252 = vld [vmem:[%s3 + $0x68] sm:$0xff]
    %v253 = vld [vmem:[%s3 + $0x70] sm:$0xff]
    %v254 = vld [vmem:[%s3 + $0x78] sm:$0xff]
    %v255 = vld [vmem:[%s3 + $0x80] sm:$0xff]
    %v256 = vld [vmem:[%s3 + $0x88] sm:$0xff]
    %v257 = vld [vmem:[%s3 + $0x90] sm:$0xff]
    %v258 = vld [vmem:[%s3 + $0x98] sm:$0xff]
    %v259 = vld [vmem:[%s3 + $0xa0] sm:$0xff]
    %v260 = vld [vmem:[%s3 + $0xa8] sm:$0xff]
    %v261 = vld [vmem:[%s3 + $0xb0] sm:$0xff]
    %v262 = vld [vmem:[%s3 + $0xb8] sm:$0xff]
    %v263 = vld [vmem:[%s3 + $0xc0] sm:$0xff]
    %v264 = vld [vmem:[%s3 + $0xc8] sm:$0xff]
    %v265 = vld [vmem:[%s3 + $0xd0] sm:$0xff]
    %v266 = vld [vmem:[%s3 + $0xd8] sm:$0xff]
    %v267 = vld [vmem:[%s3 + $0xe0] sm:$0xff]
    %v268 = vld [vmem:[%s3 + $0xe8] sm:$0xff]
    %v269 = vld [vmem:[%s3 + $0xf0] sm:$0xff]
    %v270 = vld [vmem:[%s3 + $0xf8] sm:$0xff]
    %v271 = vld [vmem:[%s3 + $0x100] sm:$0xff]
    %v272 = vld [vmem:[%s3 + $0x108] sm:$0xff]
    %v273 = vld [vmem:[%s3 + $0x110] sm:$0xff]
    %v274 = vld [vmem:[%s3 + $0x118] sm:$0xff]
    %v275 = vld [vmem:[%s3 + $0x120] sm:$0xff]
    %v276 = vld [vmem:[%s3 + $0x128] sm:$0xff]
    %v277 = vld [vmem:[%s3 + $0x130] sm:$0xff]
    %v278 = vld [vmem:[%s3 + $0x138] sm:$0xff]
    %v279 = vld [vmem:[%s3 + $0x140] sm:$0xff]
    %v280 = vld [vmem:[%s3 + $0x148] sm:$0xff]
    %v281 = vld [vmem:[%s3 + $0x150] sm:$0xff]
    %v282 = vld [vmem:[%s3 + $0x158] sm:$0xff]
    %v283 = vld [vmem:[%s3 + $0x160] sm:$0xff]
    %v284 = vld [vmem:[%s3 + $0x168] sm:$0xff]
    %v285 = vld [vmem:[%s3 + $0x170] sm:$0xff]
    %v286 = vld [vmem:[%s3 + $0x178] sm:$0xff]
    %v287 = vld [vmem:[%s3 + $0x180] sm:$0xff]
    %v288 = vld [vmem:[%s3 + $0x188] sm:$0xff]
    %v289 = vld [vmem:[%s3 + $0x190] sm:$0xff]
    %v290 = vld [vmem:[%s3 + $0x198] sm:$0xff]
    %v291 = vld [vmem:[%s3 + $0x1a0] sm:$0xff]
    %v292 = vld [vmem:[%s3 + $0x1a8] sm:$0xff]
    %v293 = vld [vmem:[%s3 + $0x1b0] sm:$0xff]
    %v294 = vld [vmem:[%s3 + $0x1b8] sm:$0xff]
    %v295 = vld [vmem:[%s3 + $0x1c0] sm:$0xff]
    %v296 = vld [vmem:[%s3 + $0x1c8] sm:$0xff]
    %v297 = vld [vmem:[%s3 + $0x1d0] sm:$0xff]
    %v298 = vld [vmem:[%s3 + $0x1d8] sm:$0xff]
    %v299 = vld [vmem:[%s3 + $0x1e0] sm:$0xff]
    %v300 = vld [vmem:[%s3 + $0x1e8] sm:$0xff]
    %v301 = vld [vmem:[%s3 + $0x1f0] sm:$0xff]
    %v302 = vld [vmem:[%s3 + $0x1f8] sm:$0xff]
    %v303 = vld [vmem:[%s3 + $0x200] sm:$0xff]
    %v304 = vld [vmem:[%s3 + $0x208] sm:$0xff]
    %v305 = vld [vmem:[%s3 + $0x210] sm:$0xff]
    %v306 = vld [vmem:[%s3 + $0x218] sm:$0xff]
    %v307 = vld [vmem:[%s3 + $0x220] sm:$0xff]
    %v308 = vld [vmem:[%s3 + $0x228] sm:$0xff]
    %v309 = vld [vmem:[%s3 + $0x230] sm:$0xff]
    %v310 = vld [vmem:[%s3 + $0x238] sm:$0xff]
    %v311 = vld [vmem:[%s3 + $0x240] sm:$0xff]
    %v312 = vld [vmem:[%s3 + $0x248] sm:$0xff]
    %v313 = vld [vmem:[%s3 + $0x250] sm:$0xff]
    %v314 = vld [vmem:[%s3 + $0x258] sm:$0xff]
    %v315 = vld [vmem:[%s3 + $0x260] sm:$0xff]
    %v316 = vld [vmem:[%s3 + $0x268] sm:$0xff]
    %v317 = vld [vmem:[%s3 + $0x270] sm:$0xff]
    %v318 = vld [vmem:[%s3 + $0x278] sm:$0xff]
    %v319 = vld [vmem:[%s3 + $0x280] sm:$0xff]
    %v320 = vld [vmem:[%s3 + $0x288] sm:$0xff]
    %v321 = vld [vmem:[%s3 + $0x290] sm:$0xff]
    %v322 = vld [vmem:[%s3 + $0x298] sm:$0xff]
    %v323 = vld [vmem:[%s3 + $0x2a0] sm:$0xff]
    %v324 = vld [vmem:[%s3 + $0x2a8] sm:$0xff]
    %v325 = vld [vmem:[%s3 + $0x2b0] sm:$0xff]
    %v326 = vld [vmem:[%s3 + $0x2b8] sm:$0xff]
    %v327 = vld [vmem:[%s3 + $0x2c0] sm:$0xff]
    %v328 = vld [vmem:[%s3 + $0x2c8] sm:$0xff]
    %v329 = vld [vmem:[%s3 + $0x2d0] sm:$0xff]
    %v330 = vld [vmem:[%s3 + $0x2d8] sm:$0xff]
    %v331 = vld [vmem:[%s3 + $0x2e0] sm:$0xff]
    %v332 = vld [vmem:[%s3 + $0x2e8] sm:$0xff]
    %v333 = vld [vmem:[%s3 + $0x2f0] sm:$0xff]
    %v334 = vld [vmem:[%s3 + $0x2f8] sm:$0xff]
    %v335 = vld [vmem:[%s3 + $0x300] sm:$0xff]
    %v336 = vld [vmem:[%s3 + $0x308] sm:$0xff]
    %v337 = vld [vmem:[%s3 + $0x310] sm:$0xff]
    %v338 = vld [vmem:[%s3 + $0x318] sm:$0xff]
    %v339 = vld [vmem:[%s3 + $0x320] sm:$0xff]
    %v340 = vld [vmem:[%s3 + $0x328] sm:$0xff]
    %v341 = vld [vmem:[%s3 + $0x330] sm:$0xff]
    %v342 = vld [vmem:[%s3 + $0x338] sm:$0xff]
    %v343 = vld [vmem:[%s3 + $0x340] sm:$0xff]
    %v344 = vld [vmem:[%s3 + $0x348] sm:$0xff]
    %v345 = vld [vmem:[%s3 + $0x350] sm:$0xff]
    %v346 = vld [vmem:[%s3 + $0x358] sm:$0xff]
    %v347 = vld [vmem:[%s3 + $0x360] sm:$0xff]
    %v348 = vld [vmem:[%s3 + $0x368] sm:$0xff]
    %v349 = vld [vmem:[%s3 + $0x370] sm:$0xff]
    %v350 = vld [vmem:[%s3 + $0x378] sm:$0xff]
    %v351 = vld [vmem:[%s3 + $0x380] sm:$0xff]
    %v352 = vld [vmem:[%s3 + $0x388] sm:$0xff]
    %v353 = vld [vmem:[%s3 + $0x390] sm:$0xff]
    %v354 = vld [vmem:[%s3 + $0x398] sm:$0xff]
    %v355 = vld [vmem:[%s3 + $0x3a0] sm:$0xff]
    %v356 = vld [vmem:[%s3 + $0x3a8] sm:$0xff]
    %v357 = vld [vmem:[%s3 + $0x3b0] sm:$0xff]
    %v358 = vld [vmem:[%s3 + $0x3b8] sm:$0xff]
    %v359 = vld [vmem:[%s4] sm:$0x7]
    %v361 = vlaneseq
    %v362 = vshrl.u32 %v361, 7
    %v363 = vsub.s32 0, %v362
    %v364 = vrot.slane %v359, %v363
    %v365 = vlaneseq
    %v366 = vshrl.u32 %v365, 7
    %v367 = vsub.s32 1, %v366
    %v368 = vrot.slane %v359, %v367
    %v369 = vlaneseq
    %v370 = vshrl.u32 %v369, 7
    %v371 = vsub.s32 2, %v370
    %v372 = vrot.slane %v359, %v371
    %vm376 = vcmask 523264
    %v378 = vsel %vm376, %v238, 0
    %380 = vmatprep.subr.mxu0 %v240
    %381 = vmatpush1.msra.mxu0 %v239
    %382 = vmatprep.subr.mxu0 %v243
    %383 = vmatpush1.msra.mxu0 %v242
    %384 = vmatprep.subr.mxu0 %v246
    %385 = vmatpush1.msra.mxu0 %v245
    %386 = vmatprep.subr.mxu0 %v249
    %387 = vmatpush1.msra.mxu0 %v248
    %388 = vmatprep.subr.mxu0 %v252
    %389 = vmatpush1.msra.mxu0 %v251
    %390 = vmatprep.subr.mxu0 %v255
    %391 = vmatpush1.msra.mxu0 %v254
    %392 = vmatprep.subr.mxu0 %v258
    %393 = vmatpush1.msra.mxu0 %v257
    %394 = vmatprep.subr.mxu0 %v261
    %395 = vmatpush1.msra.mxu0 %v260
    %396 = vmatprep.subr.mxu0 %v264
    %397 = vmatpush1.msra.mxu0 %v263
    %398 = vmatprep.subr.mxu0 %v267
    %399 = vmatpush1.msra.mxu0 %v266
    %400 = vmatprep.subr.mxu0 %v270
    %401 = vmatpush1.msra.mxu0 %v269
    %402 = vmatprep.subr.mxu0 %v273
    %403 = vmatpush1.msra.mxu0 %v272
    %404 = vmatprep.subr.mxu0 %v276
    %405 = vmatpush1.msra.mxu0 %v275
    %406 = vmatprep.subr.mxu0 %v279
    %407 = vmatpush1.msra.mxu0 %v278
    %408 = vmatprep.subr.mxu0 %v282
    %409 = vmatpush1.msra.mxu0 %v281
    %410 = vmatprep.subr.mxu0 %v285
    %411 = vmatpush1.msra.mxu0 %v284
    %412 = vmatprep.subr.mxu0 %v288
    %413 = vmatpush1.msra.mxu0 %v287
    %414 = vmatprep.subr.mxu0 %v291
    %415 = vmatpush1.msra.mxu0 %v290
    %416 = vmatprep.subr.mxu0 %v294
    %417 = vmatpush1.msra.mxu0 %v293
    %418 = vmatprep.subr.mxu0 %v297
    %419 = vmatpush1.msra.mxu0 %v296
    %420 = vmatprep.subr.mxu0 %v300
    %421 = vmatpush1.msra.mxu0 %v299
    %422 = vmatprep.subr.mxu0 %v303
    %423 = vmatpush1.msra.mxu0 %v302
    %424 = vmatprep.subr.mxu0 %v306
    %425 = vmatpush1.msra.mxu0 %v305
    %426 = vmatprep.subr.mxu0 %v309
    %427 = vmatpush1.msra.mxu0 %v308
    %428 = vmatprep.subr.mxu0 %v312
    %429 = vmatpush1.msra.mxu0 %v311
    %430 = vmatprep.subr.mxu0 %v315
    %431 = vmatpush1.msra.mxu0 %v314
    %432 = vmatprep.subr.mxu0 %v318
    %433 = vmatpush1.msra.mxu0 %v317
    %434 = vmatprep.subr.mxu0 %v321
    %435 = vmatpush1.msra.mxu0 %v320
    %436 = vmatprep.subr.mxu0 %v324
    %437 = vmatpush1.msra.mxu0 %v323
    %438 = vmatprep.subr.mxu0 %v327
    %439 = vmatpush1.msra.mxu0 %v326
    %440 = vmatprep.subr.mxu0 %v330
    %441 = vmatpush1.msra.mxu0 %v329
    %442 = vmatprep.subr.mxu0 %v333
    %443 = vmatpush1.msra.mxu0 %v332
    %444 = vmatprep.mubr.f32.mxu0 %v237
    %445 = vmatmul.mubr.f32.gmra.mrb[0].mxu0 %v236
    %v446 = vpop.f32.mrb[0].mxu0
    %v447 = vadd.f32 %v364, %v446
    %v448 = vpop.f32.mrb[0].mxu0
    %v449 = vadd.f32 %v368, %v448
    %450 = vdwg.mxu0
    %451 = vmatprep.subr.mxu0 %v336
    %452 = vmatpush1.msra.mxu0 %v335
    %453 = vmatprep.subr.mxu0 %v339
    %454 = vmatpush1.msra.mxu0 %v338
    %455 = vmatprep.subr.mxu0 %v342
    %456 = vmatpush1.msra.mxu0 %v341
    %457 = vmatprep.subr.mxu0 %v345
    %458 = vmatpush1.msra.mxu0 %v344
    %459 = vmatprep.subr.mxu0 %v348
    %460 = vmatpush1.msra.mxu0 %v347
    %461 = vmatprep.subr.mxu0 %v351
    %462 = vmatpush1.msra.mxu0 %v350
    %463 = vmatprep.subr.mxu0 %v354
    %464 = vmatpush1.msra.mxu0 %v353
    %465 = vmatprep.subr.mxu0 %v357
    %466 = vmatpush1.msra.mxu0 %v356
    %467 = vmatprep.subr.mxu0 0.0
    %468 = vmatpush1.msra.mxu0 0.0
    %469 = vmatprep.subr.mxu0 0.0
    %470 = vmatpush1.msra.mxu0 0.0
    %471 = vmatprep.subr.mxu0 0.0
    %472 = vmatpush1.msra.mxu0 0.0
    %473 = vmatprep.subr.mxu0 0.0
    %474 = vmatpush1.msra.mxu0 0.0
    %475 = vmatprep.subr.mxu0 0.0
    %476 = vmatpush1.msra.mxu0 0.0
    %477 = vmatprep.subr.mxu0 0.0
    %478 = vmatpush1.msra.mxu0 0.0
    %479 = vmatprep.subr.mxu0 0.0
    %480 = vmatpush1.msra.mxu0 0.0
    %481 = vmatprep.subr.mxu0 0.0
    %482 = vmatpush1.msra.mxu0 0.0
    %483 = vmatprep.subr.mxu0 0.0
    %484 = vmatpush1.msra.mxu0 0.0
    %485 = vmatprep.subr.mxu0 0.0
    %486 = vmatpush1.msra.mxu0 0.0
    %487 = vmatprep.subr.mxu0 0.0
    %488 = vmatpush1.msra.mxu0 0.0
    %489 = vmatprep.subr.mxu0 0.0
    %490 = vmatpush1.msra.mxu0 0.0
    %491 = vmatprep.subr.mxu0 0.0
    %492 = vmatpush1.msra.mxu0 0.0
    %493 = vmatprep.subr.mxu0 0.0
    %494 = vmatpush1.msra.mxu0 0.0
    %495 = vmatprep.subr.mxu0 0.0
    %496 = vmatpush1.msra.mxu0 0.0
    %497 = vmatprep.subr.mxu0 0.0
    %498 = vmatpush1.msra.mxu0 0.0
    %499 = vmatprep.subr.mxu0 0.0
    %500 = vmatpush1.msra.mxu0 0.0
    %501 = vmatprep.subr.mxu0 0.0
    %502 = vmatpush1.msra.mxu0 0.0
    %503 = vmatprep.subr.mxu0 0.0
    %504 = vmatpush1.msra.mxu0 0.0
    %505 = vmatprep.subr.mxu0 0.0
    %506 = vmatpush1.msra.mxu0 0.0
    %507 = vmatprep.subr.mxu0 0.0
    %508 = vmatpush1.msra.mxu0 0.0
    %509 = vmatprep.subr.mxu0 0.0
    %510 = vmatpush1.msra.mxu0 0.0
    %511 = vmatprep.subr.mxu0 0.0
    %512 = vmatpush1.msra.mxu0 0.0
    %513 = vmatprep.subr.mxu0 0.0
    %514 = vmatpush1.msra.mxu0 0.0
    %515 = vmatprep.mubr.f32.mxu0 0.0
    %516 = vmatmul.mubr.f32.gmra.mrb[0].mxu0 %v378
    %v517 = vpop.f32.mrb[0].mxu0
    %v518 = vadd.f32 %v447, %v517
    %v519 = vpop.f32.mrb[0].mxu0
    %v520 = vadd.f32 %v449, %v519
    %521 = vdwg.mxu0
    %522 = vmatprep.subr.mxu0 0.0
    %523 = vmatpush1.msra.mxu0 %v241
    %524 = vmatprep.subr.mxu0 0.0
    %525 = vmatpush1.msra.mxu0 %v244
    %526 = vmatprep.subr.mxu0 0.0
    %527 = vmatpush1.msra.mxu0 %v247
    %528 = vmatprep.subr.mxu0 0.0
    %529 = vmatpush1.msra.mxu0 %v250
    %530 = vmatprep.subr.mxu0 0.0
    %531 = vmatpush1.msra.mxu0 %v253
    %532 = vmatprep.subr.mxu0 0.0
    %533 = vmatpush1.msra.mxu0 %v256
    %534 = vmatprep.subr.mxu0 0.0
    %535 = vmatpush1.msra.mxu0 %v259
    %536 = vmatprep.subr.mxu0 0.0
    %537 = vmatpush1.msra.mxu0 %v262
    %538 = vmatprep.subr.mxu0 0.0
    %539 = vmatpush1.msra.mxu0 %v265
    %540 = vmatprep.subr.mxu0 0.0
    %541 = vmatpush1.msra.mxu0 %v268
    %542 = vmatprep.subr.mxu0 0.0
    %543 = vmatpush1.msra.mxu0 %v271
    %544 = vmatprep.subr.mxu0 0.0
    %545 = vmatpush1.msra.mxu0 %v274
    %546 = vmatprep.subr.mxu0 0.0
    %547 = vmatpush1.msra.mxu0 %v277
    %548 = vmatprep.subr.mxu0 0.0
    %549 = vmatpush1.msra.mxu0 %v280
    %550 = vmatprep.subr.mxu0 0.0
    %551 = vmatpush1.msra.mxu0 %v283
    %552 = vmatprep.subr.mxu0 0.0
    %553 = vmatpush1.msra.mxu0 %v286
    %554 = vmatprep.subr.mxu0 0.0
    %555 = vmatpush1.msra.mxu0 %v289
    %556 = vmatprep.subr.mxu0 0.0
    %557 = vmatpush1.msra.mxu0 %v292
    %558 = vmatprep.subr.mxu0 0.0
    %559 = vmatpush1.msra.mxu0 %v295
    %560 = vmatprep.subr.mxu0 0.0
    %561 = vmatpush1.msra.mxu0 %v298
    %562 = vmatprep.subr.mxu0 0.0
    %563 = vmatpush1.msra.mxu0 %v301
    %564 = vmatprep.subr.mxu0 0.0
    %565 = vmatpush1.msra.mxu0 %v304
    %566 = vmatprep.subr.mxu0 0.0
    %567 = vmatpush1.msra.mxu0 %v307
    %568 = vmatprep.subr.mxu0 0.0
    %569 = vmatpush1.msra.mxu0 %v310
    %570 = vmatprep.subr.mxu0 0.0
    %571 = vmatpush1.msra.mxu0 %v313
    %572 = vmatprep.subr.mxu0 0.0
    %573 = vmatpush1.msra.mxu0 %v316
    %574 = vmatprep.subr.mxu0 0.0
    %575 = vmatpush1.msra.mxu0 %v319
    %576 = vmatprep.subr.mxu0 0.0
    %577 = vmatpush1.msra.mxu0 %v322
    %578 = vmatprep.subr.mxu0 0.0
    %579 = vmatpush1.msra.mxu0 %v325
    %580 = vmatprep.subr.mxu0 0.0
    %581 = vmatpush1.msra.mxu0 %v328
    %582 = vmatprep.subr.mxu0 0.0
    %583 = vmatpush1.msra.mxu0 %v331
    %584 = vmatprep.subr.mxu0 0.0
    %585 = vmatpush1.msra.mxu0 %v334
    %586 = vmatprep.mubr.f32.mxu0 %v237
    %587 = vmatmul.mubr.f32.gmra.mrb[0].mxu0 %v236
    %v588 = vpop.f32.mrb[0].mxu0
    %v589 = vadd.f32 %v372, %v588
    %v590 = vpop.f32.mrb[0].mxu0
    %591 = vdwg.mxu0
    %592 = vmatprep.subr.mxu0 0.0
    %593 = vmatpush1.msra.mxu0 %v337
    %594 = vmatprep.subr.mxu0 0.0
    %595 = vmatpush1.msra.mxu0 %v340
    %596 = vmatprep.subr.mxu0 0.0
    %597 = vmatpush1.msra.mxu0 %v343
    %598 = vmatprep.subr.mxu0 0.0
    %599 = vmatpush1.msra.mxu0 %v346
    %600 = vmatprep.subr.mxu0 0.0
    %601 = vmatpush1.msra.mxu0 %v349
    %602 = vmatprep.subr.mxu0 0.0
    %603 = vmatpush1.msra.mxu0 %v352
    %604 = vmatprep.subr.mxu0 0.0
    %605 = vmatpush1.msra.mxu0 %v355
    %606 = vmatprep.subr.mxu0 0.0
    %607 = vmatpush1.msra.mxu0 %v358
    %608 = vmatprep.subr.mxu0 0.0
    %609 = vmatpush1.msra.mxu0 0.0
    %610 = vmatprep.subr.mxu0 0.0
    %611 = vmatpush1.msra.mxu0 0.0
    %612 = vmatprep.subr.mxu0 0.0
    %613 = vmatpush1.msra.mxu0 0.0
    %614 = vmatprep.subr.mxu0 0.0
    %615 = vmatpush1.msra.mxu0 0.0
    %616 = vmatprep.subr.mxu0 0.0
    %617 = vmatpush1.msra.mxu0 0.0
    %618 = vmatprep.subr.mxu0 0.0
    %619 = vmatpush1.msra.mxu0 0.0
    %620 = vmatprep.subr.mxu0 0.0
    %621 = vmatpush1.msra.mxu0 0.0
    %622 = vmatprep.subr.mxu0 0.0
    %623 = vmatpush1.msra.mxu0 0.0
    %624 = vmatprep.subr.mxu0 0.0
    %625 = vmatpush1.msra.mxu0 0.0
    %626 = vmatprep.subr.mxu0 0.0
    %627 = vmatpush1.msra.mxu0 0.0
    %628 = vmatprep.subr.mxu0 0.0
    %629 = vmatpush1.msra.mxu0 0.0
    %630 = vmatprep.subr.mxu0 0.0
    %631 = vmatpush1.msra.mxu0 0.0
    %632 = vmatprep.subr.mxu0 0.0
    %633 = vmatpush1.msra.mxu0 0.0
    %634 = vmatprep.subr.mxu0 0.0
    %635 = vmatpush1.msra.mxu0 0.0
    %636 = vmatprep.subr.mxu0 0.0
    %637 = vmatpush1.msra.mxu0 0.0
    %638 = vmatprep.subr.mxu0 0.0
    %639 = vmatpush1.msra.mxu0 0.0
    %640 = vmatprep.subr.mxu0 0.0
    %641 = vmatpush1.msra.mxu0 0.0
    %642 = vmatprep.subr.mxu0 0.0
    %643 = vmatpush1.msra.mxu0 0.0
    %644 = vmatprep.subr.mxu0 0.0
    %645 = vmatpush1.msra.mxu0 0.0
    %646 = vmatprep.subr.mxu0 0.0
    %647 = vmatpush1.msra.mxu0 0.0
    %648 = vmatprep.subr.mxu0 0.0
    %649 = vmatpush1.msra.mxu0 0.0
    %650 = vmatprep.subr.mxu0 0.0
    %651 = vmatpush1.msra.mxu0 0.0
    %652 = vmatprep.subr.mxu0 0.0
    %653 = vmatpush1.msra.mxu0 0.0
    %654 = vmatprep.subr.mxu0 0.0
    %655 = vmatpush1.msra.mxu0 0.0
    %656 = vmatprep.mubr.f32.mxu0 0.0
    %657 = vmatmul.mubr.f32.gmra.mrb[0].mxu0 %v378
    %v658 = vpop.f32.mrb[0].mxu0
    %v659 = vadd.f32 %v589, %v658
    %v660 = vpop.f32.mrb[0].mxu0
    %661 = vdwg.mxu0
    %v662 = vmax.f32 %v518, 0.0
    %v663 = vmax.f32 %v520, 0.0
    %v664 = vmax.f32 %v659, 0.0
    %v665 = vld [vmem:[#allocation3] sm:$0xff]
    %v666 = vld [vmem:[#allocation3 + $0x8] sm:$0xff]
    %v667 = vld [vmem:[#allocation3 + $0x10] sm:$0xff]
    %v668 = vld [vmem:[#allocation3 + $0x18] sm:$0xff]
    %v669 = vld [vmem:[#allocation3 + $0x20] sm:$0xff]
    %v670 = vld [vmem:[#allocation3 + $0x28] sm:$0xff]
    %v671 = vld [vmem:[#allocation3 + $0x30] sm:$0xff]
    %v672 = vld [vmem:[#allocation3 + $0x38] sm:$0xff]
    %v673 = vld [vmem:[#allocation3 + $0x40] sm:$0xff]
    %v674 = vld [vmem:[#allocation3 + $0x48] sm:$0xff]
    %v675 = vld [vmem:[#allocation3 + $0x50] sm:$0xff]
    %v676 = vld [vmem:[#allocation3 + $0x58] sm:$0xff]
    %v677 = vld [vmem:[#allocation3 + $0x60] sm:$0xff]
    %v678 = vld [vmem:[#allocation3 + $0x68] sm:$0xff]
    %v679 = vld [vmem:[#allocation3 + $0x70] sm:$0xff]
    %v680 = vld [vmem:[#allocation3 + $0x78] sm:$0xff]
    %v681 = vld [vmem:[#allocation3 + $0x80] sm:$0xff]
    %v682 = vld [vmem:[#allocation3 + $0x88] sm:$0xff]
    %v683 = vld [vmem:[#allocation3 + $0x90] sm:$0xff]
    %v684 = vld [vmem:[#allocation3 + $0x98] sm:$0xff]
    %v685 = vld [vmem:[#allocation3 + $0xa0] sm:$0xff]
    %v686 = vld [vmem:[#allocation3 + $0xa8] sm:$0xff]
    %v687 = vld [vmem:[#allocation3 + $0xb0] sm:$0xff]
    %v688 = vld [vmem:[#allocation3 + $0xb8] sm:$0xff]
    %v689 = vld [vmem:[#allocation3 + $0xc0] sm:$0xff]
    %v690 = vld [vmem:[#allocation3 + $0xc8] sm:$0xff]
    %v691 = vld [vmem:[#allocation3 + $0xd0] sm:$0xff]
    %v692 = vld [vmem:[#allocation3 + $0xd8] sm:$0xff]
    %v693 = vld [vmem:[#allocation3 + $0xe0] sm:$0xff]
    %v694 = vld [vmem:[#allocation3 + $0xe8] sm:$0xff]
    %v695 = vld [vmem:[#allocation3 + $0xf0] sm:$0xff]
    %v696 = vld [vmem:[#allocation3 + $0xf8] sm:$0xff]
    %v697 = vld [vmem:[#allocation3 + $0x100] sm:$0xff]
    %v698 = vld [vmem:[#allocation3 + $0x108] sm:$0xff]
    %v699 = vld [vmem:[#allocation3 + $0x110] sm:$0xff]
    %v700 = vld [vmem:[#allocation3 + $0x118] sm:$0xff]
    %v701 = vld [vmem:[#allocation3 + $0x120] sm:$0xff]
    %v702 = vld [vmem:[#allocation3 + $0x128] sm:$0xff]
    %v703 = vld [vmem:[#allocation3 + $0x130] sm:$0xff]
    %v704 = vld [vmem:[#allocation3 + $0x138] sm:$0xff]
    %v705 = vld [vmem:[#allocation3 + $0x140] sm:$0xff]
    %v706 = vld [vmem:[#allocation3 + $0x148] sm:$0xff]
    %v707 = vld [vmem:[#allocation3 + $0x150] sm:$0xff]
    %v708 = vld [vmem:[#allocation3 + $0x158] sm:$0xff]
    %v709 = vld [vmem:[#allocation3 + $0x160] sm:$0xff]
    %v710 = vld [vmem:[#allocation3 + $0x168] sm:$0xff]
    %v711 = vld [vmem:[#allocation3 + $0x170] sm:$0xff]
    %v712 = vld [vmem:[#allocation3 + $0x178] sm:$0xff]
    %v713 = vld [vmem:[#allocation3 + $0x180] sm:$0xff]
    %v714 = vld [vmem:[#allocation3 + $0x188] sm:$0xff]
    %v715 = vld [vmem:[#allocation3 + $0x190] sm:$0xff]
    %v716 = vld [vmem:[#allocation3 + $0x198] sm:$0xff]
    %v717 = vld [vmem:[#allocation3 + $0x1a0] sm:$0xff]
    %v718 = vld [vmem:[#allocation3 + $0x1a8] sm:$0xff]
    %v719 = vld [vmem:[#allocation3 + $0x1b0] sm:$0xff]
    %v720 = vld [vmem:[#allocation3 + $0x1b8] sm:$0xff]
    %v721 = vld [vmem:[#allocation3 + $0x1c0] sm:$0xff]
    %v722 = vld [vmem:[#allocation3 + $0x1c8] sm:$0xff]
    %v723 = vld [vmem:[#allocation3 + $0x1d0] sm:$0xff]
    %v724 = vld [vmem:[#allocation3 + $0x1d8] sm:$0xff]
    %v725 = vld [vmem:[#allocation3 + $0x1e0] sm:$0xff]
    %v726 = vld [vmem:[#allocation3 + $0x1e8] sm:$0xff]
    %v727 = vld [vmem:[#allocation3 + $0x1f0] sm:$0xff]
    %v728 = vld [vmem:[#allocation3 + $0x1f8] sm:$0xff]
    %v729 = vld [vmem:[#allocation3 + $0x200] sm:$0xff]
    %v730 = vld [vmem:[#allocation3 + $0x208] sm:$0xff]
    %v731 = vld [vmem:[#allocation3 + $0x210] sm:$0xff]
    %v732 = vld [vmem:[#allocation3 + $0x218] sm:$0xff]
    %v733 = vld [vmem:[#allocation3 + $0x220] sm:$0xff]
    %v734 = vld [vmem:[#allocation3 + $0x228] sm:$0xff]
    %v735 = vld [vmem:[#allocation3 + $0x230] sm:$0xff]
    %v736 = vld [vmem:[#allocation3 + $0x238] sm:$0xff]
    %v737 = vld [vmem:[#allocation3 + $0x240] sm:$0xff]
    %v738 = vld [vmem:[#allocation3 + $0x248] sm:$0xff]
    %v739 = vld [vmem:[#allocation3 + $0x250] sm:$0xff]
    %v740 = vld [vmem:[#allocation3 + $0x258] sm:$0xff]
    %v741 = vld [vmem:[#allocation3 + $0x260] sm:$0xff]
    %v742 = vld [vmem:[#allocation3 + $0x268] sm:$0xff]
    %v743 = vld [vmem:[#allocation3 + $0x270] sm:$0xff]
    %v744 = vld [vmem:[#allocation3 + $0x278] sm:$0xff]
    %v745 = vld [vmem:[#allocation3 + $0x280] sm:$0xff]
    %v746 = vld [vmem:[#allocation3 + $0x288] sm:$0xff]
    %v747 = vld [vmem:[#allocation3 + $0x290] sm:$0xff]
    %v748 = vld [vmem:[#allocation3 + $0x298] sm:$0xff]
    %v749 = vld [vmem:[#allocation3 + $0x2a0] sm:$0xff]
    %v750 = vld [vmem:[#allocation3 + $0x2a8] sm:$0xff]
    %v751 = vld [vmem:[#allocation3 + $0x2b0] sm:$0xff]
    %v752 = vld [vmem:[#allocation3 + $0x2b8] sm:$0xff]
    %v753 = vld [vmem:[#allocation3 + $0x2c0] sm:$0xff]
    %v754 = vld [vmem:[#allocation3 + $0x2c8] sm:$0xff]
    %v755 = vld [vmem:[#allocation3 + $0x2d0] sm:$0xff]
    %v756 = vld [vmem:[#allocation3 + $0x2d8] sm:$0xff]
    %v757 = vld [vmem:[#allocation3 + $0x2e0] sm:$0xff]
    %v758 = vld [vmem:[#allocation3 + $0x2e8] sm:$0xff]
    %v759 = vld [vmem:[#allocation3 + $0x2f0] sm:$0xff]
    %v760 = vld [vmem:[#allocation3 + $0x2f8] sm:$0xff]
    %v761 = vld [vmem:[#allocation3 + $0x300] sm:$0xff]
    %v762 = vld [vmem:[#allocation3 + $0x308] sm:$0xff]
    %v763 = vld [vmem:[#allocation3 + $0x310] sm:$0xff]
    %v764 = vld [vmem:[#allocation3 + $0x318] sm:$0xff]
    %v765 = vld [vmem:[#allocation3 + $0x320] sm:$0xff]
    %v766 = vld [vmem:[#allocation3 + $0x328] sm:$0xff]
    %v767 = vld [vmem:[#allocation3 + $0x330] sm:$0xff]
    %v768 = vld [vmem:[#allocation3 + $0x338] sm:$0xff]
    %v769 = vld [vmem:[#allocation3 + $0x340] sm:$0xff]
    %v770 = vld [vmem:[#allocation3 + $0x348] sm:$0xff]
    %v771 = vld [vmem:[#allocation3 + $0x350] sm:$0xff]
    %v772 = vld [vmem:[#allocation3 + $0x358] sm:$0xff]
    %v773 = vld [vmem:[#allocation3 + $0x360] sm:$0xff]
    %v774 = vld [vmem:[#allocation3 + $0x368] sm:$0xff]
    %v775 = vld [vmem:[#allocation3 + $0x370] sm:$0xff]
    %v776 = vld [vmem:[#allocation3 + $0x378] sm:$0xff]
    %v777 = vld [vmem:[#allocation3 + $0x380] sm:$0xff]
    %v778 = vld [vmem:[#allocation3 + $0x388] sm:$0xff]
    %v779 = vld [vmem:[#allocation3 + $0x390] sm:$0xff]
    %v780 = vld [vmem:[#allocation3 + $0x398] sm:$0xff]
    %v781 = vld [vmem:[#allocation3 + $0x3a0] sm:$0xff]
    %v782 = vld [vmem:[#allocation3 + $0x3a8] sm:$0xff]
    %v783 = vld [vmem:[#allocation3 + $0x3b0] sm:$0xff]
    %v784 = vld [vmem:[#allocation3 + $0x3b8] sm:$0xff]
    %v785 = vld [vmem:[%s6] sm:$0x7]
    %v787 = vlaneseq
    %v788 = vshrl.u32 %v787, 7
    %v789 = vsub.s32 0, %v788
    %v790 = vrot.slane %v785, %v789
    %v791 = vlaneseq
    %v792 = vshrl.u32 %v791, 7
    %v793 = vsub.s32 1, %v792
    %v794 = vrot.slane %v785, %v793
    %v795 = vlaneseq
    %v796 = vshrl.u32 %v795, 7
    %v797 = vsub.s32 2, %v796
    %v798 = vrot.slane %v785, %v797
    %v803 = vsel %vm376, %v664, 0
    %805 = vmatprep.subr.mxu0 %v666
    %806 = vmatpush1.msra.mxu0 %v665
    %807 = vmatprep.subr.mxu0 %v669
    %808 = vmatpush1.msra.mxu0 %v668
    %809 = vmatprep.subr.mxu0 %v672
    %810 = vmatpush1.msra.mxu0 %v671
    %811 = vmatprep.subr.mxu0 %v675
    %812 = vmatpush1.msra.mxu0 %v674
    %813 = vmatprep.subr.mxu0 %v678
    %814 = vmatpush1.msra.mxu0 %v677
    %815 = vmatprep.subr.mxu0 %v681
    %816 = vmatpush1.msra.mxu0 %v680
    %817 = vmatprep.subr.mxu0 %v684
    %818 = vmatpush1.msra.mxu0 %v683
    %819 = vmatprep.subr.mxu0 %v687
    %820 = vmatpush1.msra.mxu0 %v686
    %821 = vmatprep.subr.mxu0 %v690
    %822 = vmatpush1.msra.mxu0 %v689
    %823 = vmatprep.subr.mxu0 %v693
    %824 = vmatpush1.msra.mxu0 %v692
    %825 = vmatprep.subr.mxu0 %v696
    %826 = vmatpush1.msra.mxu0 %v695
    %827 = vmatprep.subr.mxu0 %v699
    %828 = vmatpush1.msra.mxu0 %v698
    %829 = vmatprep.subr.mxu0 %v702
    %830 = vmatpush1.msra.mxu0 %v701
    %831 = vmatprep.subr.mxu0 %v705
    %832 = vmatpush1.msra.mxu0 %v704
    %833 = vmatprep.subr.mxu0 %v708
    %834 = vmatpush1.msra.mxu0 %v707
    %835 = vmatprep.subr.mxu0 %v711
    %836 = vmatpush1.msra.mxu0 %v710
    %837 = vmatprep.subr.mxu0 %v714
    %838 = vmatpush1.msra.mxu0 %v713
    %839 = vmatprep.subr.mxu0 %v717
    %840 = vmatpush1.msra.mxu0 %v716
    %841 = vmatprep.subr.mxu0 %v720
    %842 = vmatpush1.msra.mxu0 %v719
    %843 = vmatprep.subr.mxu0 %v723
    %844 = vmatpush1.msra.mxu0 %v722
    %845 = vmatprep.subr.mxu0 %v726
    %846 = vmatpush1.msra.mxu0 %v725
    %847 = vmatprep.subr.mxu0 %v729
    %848 = vmatpush1.msra.mxu0 %v728
    %849 = vmatprep.subr.mxu0 %v732
    %850 = vmatpush1.msra.mxu0 %v731
    %851 = vmatprep.subr.mxu0 %v735
    %852 = vmatpush1.msra.mxu0 %v734
    %853 = vmatprep.subr.mxu0 %v738
    %854 = vmatpush1.msra.mxu0 %v737
    %855 = vmatprep.subr.mxu0 %v741
    %856 = vmatpush1.msra.mxu0 %v740
    %857 = vmatprep.subr.mxu0 %v744
    %858 = vmatpush1.msra.mxu0 %v743
    %859 = vmatprep.subr.mxu0 %v747
    %860 = vmatpush1.msra.mxu0 %v746
    %861 = vmatprep.subr.mxu0 %v750
    %862 = vmatpush1.msra.mxu0 %v749
    %863 = vmatprep.subr.mxu0 %v753
    %864 = vmatpush1.msra.mxu0 %v752
    %865 = vmatprep.subr.mxu0 %v756
    %866 = vmatpush1.msra.mxu0 %v755
    %867 = vmatprep.subr.mxu0 %v759
    %868 = vmatpush1.msra.mxu0 %v758
    %869 = vmatprep.mubr.f32.mxu0 %v663
    %870 = vmatmul.mubr.f32.gmra.mrb[0].mxu0 %v662
    %v871 = vpop.f32.mrb[0].mxu0
    %v872 = vadd.f32 %v790, %v871
    %v873 = vpop.f32.mrb[0].mxu0
    %v874 = vadd.f32 %v794, %v873
    %875 = vdwg.mxu0
    %876 = vmatprep.subr.mxu0 %v762
    %877 = vmatpush1.msra.mxu0 %v761
    %878 = vmatprep.subr.mxu0 %v765
    %879 = vmatpush1.msra.mxu0 %v764
    %880 = vmatprep.subr.mxu0 %v768
    %881 = vmatpush1.msra.mxu0 %v767
    %882 = vmatprep.subr.mxu0 %v771
    %883 = vmatpush1.msra.mxu0 %v770
    %884 = vmatprep.subr.mxu0 %v774
    %885 = vmatpush1.msra.mxu0 %v773
    %886 = vmatprep.subr.mxu0 %v777
    %887 = vmatpush1.msra.mxu0 %v776
    %888 = vmatprep.subr.mxu0 %v780
    %889 = vmatpush1.msra.mxu0 %v779
    %890 = vmatprep.subr.mxu0 %v783
    %891 = vmatpush1.msra.mxu0 %v782
    %892 = vmatprep.subr.mxu0 0.0
    %893 = vmatpush1.msra.mxu0 0.0
    %894 = vmatprep.subr.mxu0 0.0
    %895 = vmatpush1.msra.mxu0 0.0
    %896 = vmatprep.subr.mxu0 0.0
    %897 = vmatpush1.msra.mxu0 0.0
    %898 = vmatprep.subr.mxu0 0.0
    %899 = vmatpush1.msra.mxu0 0.0
    %900 = vmatprep.subr.mxu0 0.0
    %901 = vmatpush1.msra.mxu0 0.0
    %902 = vmatprep.subr.mxu0 0.0
    %903 = vmatpush1.msra.mxu0 0.0
    %904 = vmatprep.subr.mxu0 0.0
    %905 = vmatpush1.msra.mxu0 0.0
    %906 = vmatprep.subr.mxu0 0.0
    %907 = vmatpush1.msra.mxu0 0.0
    %908 = vmatprep.subr.mxu0 0.0
    %909 = vmatpush1.msra.mxu0 0.0
    %910 = vmatprep.subr.mxu0 0.0
    %911 = vmatpush1.msra.mxu0 0.0
    %912 = vmatprep.subr.mxu0 0.0
    %913 = vmatpush1.msra.mxu0 0.0
    %914 = vmatprep.subr.mxu0 0.0
    %915 = vmatpush1.msra.mxu0 0.0
    %916 = vmatprep.subr.mxu0 0.0
    %917 = vmatpush1.msra.mxu0 0.0
    %918 = vmatprep.subr.mxu0 0.0
    %919 = vmatpush1.msra.mxu0 0.0
    %920 = vmatprep.subr.mxu0 0.0
    %921 = vmatpush1.msra.mxu0 0.0
    %922 = vmatprep.subr.mxu0 0.0
    %923 = vmatpush1.msra.mxu0 0.0
    %924 = vmatprep.subr.mxu0 0.0
    %925 = vmatpush1.msra.mxu0 0.0
    %926 = vmatprep.subr.mxu0 0.0
    %927 = vmatpush1.msra.mxu0 0.0
    %928 = vmatprep.subr.mxu0 0.0
    %929 = vmatpush1.msra.mxu0 0.0
    %930 = vmatprep.subr.mxu0 0.0
    %931 = vmatpush1.msra.mxu0 0.0
    %932 = vmatprep.subr.mxu0 0.0
    %933 = vmatpush1.msra.mxu0 0.0
    %934 = vmatprep.subr.mxu0 0.0
    %935 = vmatpush1.msra.mxu0 0.0
    %936 = vmatprep.subr.mxu0 0.0
    %937 = vmatpush1.msra.mxu0 0.0
    %938 = vmatprep.subr.mxu0 0.0
    %939 = vmatpush1.msra.mxu0 0.0
    %940 = vmatprep.mubr.f32.mxu0 0.0
    %941 = vmatmul.mubr.f32.gmra.mrb[0].mxu0 %v803
    %v942 = vpop.f32.mrb[0].mxu0
    %v943 = vadd.f32 %v872, %v942
    %v944 = vpop.f32.mrb[0].mxu0
    %v945 = vadd.f32 %v874, %v944
    %946 = vdwg.mxu0
    %947 = vmatprep.subr.mxu0 0.0
    %948 = vmatpush1.msra.mxu0 %v667
    %949 = vmatprep.subr.mxu0 0.0
    %950 = vmatpush1.msra.mxu0 %v670
    %951 = vmatprep.subr.mxu0 0.0
    %952 = vmatpush1.msra.mxu0 %v673
    %953 = vmatprep.subr.mxu0 0.0
    %954 = vmatpush1.msra.mxu0 %v676
    %955 = vmatprep.subr.mxu0 0.0
    %956 = vmatpush1.msra.mxu0 %v679
    %957 = vmatprep.subr.mxu0 0.0
    %958 = vmatpush1.msra.mxu0 %v682
    %959 = vmatprep.subr.mxu0 0.0
    %960 = vmatpush1.msra.mxu0 %v685
    %961 = vmatprep.subr.mxu0 0.0
    %962 = vmatpush1.msra.mxu0 %v688
    %963 = vmatprep.subr.mxu0 0.0
    %964 = vmatpush1.msra.mxu0 %v691
    %965 = vmatprep.subr.mxu0 0.0
    %966 = vmatpush1.msra.mxu0 %v694
    %967 = vmatprep.subr.mxu0 0.0
    %968 = vmatpush1.msra.mxu0 %v697
    %969 = vmatprep.subr.mxu0 0.0
    %970 = vmatpush1.msra.mxu0 %v700
    %971 = vmatprep.subr.mxu0 0.0
    %972 = vmatpush1.msra.mxu0 %v703
    %973 = vmatprep.subr.mxu0 0.0
    %974 = vmatpush1.msra.mxu0 %v706
    %975 = vmatprep.subr.mxu0 0.0
    %976 = vmatpush1.msra.mxu0 %v709
    %977 = vmatprep.subr.mxu0 0.0
    %978 = vmatpush1.msra.mxu0 %v712
    %979 = vmatprep.subr.mxu0 0.0
    %980 = vmatpush1.msra.mxu0 %v715
    %981 = vmatprep.subr.mxu0 0.0
    %982 = vmatpush1.msra.mxu0 %v718
    %983 = vmatprep.subr.mxu0 0.0
    %984 = vmatpush1.msra.mxu0 %v721
    %985 = vmatprep.subr.mxu0 0.0
    %986 = vmatpush1.msra.mxu0 %v724
    %987 = vmatprep.subr.mxu0 0.0
    %988 = vmatpush1.msra.mxu0 %v727
    %989 = vmatprep.subr.mxu0 0.0
    %990 = vmatpush1.msra.mxu0 %v730
    %991 = vmatprep.subr.mxu0 0.0
    %992 = vmatpush1.msra.mxu0 %v733
    %993 = vmatprep.subr.mxu0 0.0
    %994 = vmatpush1.msra.mxu0 %v736
    %995 = vmatprep.subr.mxu0 0.0
    %996 = vmatpush1.msra.mxu0 %v739
    %997 = vmatprep.subr.mxu0 0.0
    %998 = vmatpush1.msra.mxu0 %v742
    %999 = vmatprep.subr.mxu0 0.0
    %1000 = vmatpush1.msra.mxu0 %v745
    %1001 = vmatprep.subr.mxu0 0.0
    %1002 = vmatpush1.msra.mxu0 %v748
    %1003 = vmatprep.subr.mxu0 0.0
    %1004 = vmatpush1.msra.mxu0 %v751
    %1005 = vmatprep.subr.mxu0 0.0
    %1006 = vmatpush1.msra.mxu0 %v754
    %1007 = vmatprep.subr.mxu0 0.0
    %1008 = vmatpush1.msra.mxu0 %v757
    %1009 = vmatprep.subr.mxu0 0.0
    %1010 = vmatpush1.msra.mxu0 %v760
    %1011 = vmatprep.mubr.f32.mxu0 %v663
    %1012 = vmatmul.mubr.f32.gmra.mrb[0].mxu0 %v662
    %v1013 = vpop.f32.mrb[0].mxu0
    %v1014 = vadd.f32 %v798, %v1013
    %v1015 = vpop.f32.mrb[0].mxu0
    %1016 = vdwg.mxu0
    %1017 = vmatprep.subr.mxu0 0.0
    %1018 = vmatpush1.msra.mxu0 %v763
    %1019 = vmatprep.subr.mxu0 0.0
    %1020 = vmatpush1.msra.mxu0 %v766
    %1021 = vmatprep.subr.mxu0 0.0
    %1022 = vmatpush1.msra.mxu0 %v769
    %1023 = vmatprep.subr.mxu0 0.0
    %1024 = vmatpush1.msra.mxu0 %v772
    %1025 = vmatprep.subr.mxu0 0.0
    %1026 = vmatpush1.msra.mxu0 %v775
    %1027 = vmatprep.subr.mxu0 0.0
    %1028 = vmatpush1.msra.mxu0 %v778
    %1029 = vmatprep.subr.mxu0 0.0
    %1030 = vmatpush1.msra.mxu0 %v781
    %1031 = vmatprep.subr.mxu0 0.0
    %1032 = vmatpush1.msra.mxu0 %v784
    %1033 = vmatprep.subr.mxu0 0.0
    %1034 = vmatpush1.msra.mxu0 0.0
    %1035 = vmatprep.subr.mxu0 0.0
    %1036 = vmatpush1.msra.mxu0 0.0
    %1037 = vmatprep.subr.mxu0 0.0
    %1038 = vmatpush1.msra.mxu0 0.0
    %1039 = vmatprep.subr.mxu0 0.0
    %1040 = vmatpush1.msra.mxu0 0.0
    %1041 = vmatprep.subr.mxu0 0.0
    %1042 = vmatpush1.msra.mxu0 0.0
    %1043 = vmatprep.subr.mxu0 0.0
    %1044 = vmatpush1.msra.mxu0 0.0
    %1045 = vmatprep.subr.mxu0 0.0
    %1046 = vmatpush1.msra.mxu0 0.0
    %1047 = vmatprep.subr.mxu0 0.0
    %1048 = vmatpush1.msra.mxu0 0.0
    %1049 = vmatprep.subr.mxu0 0.0
    %1050 = vmatpush1.msra.mxu0 0.0
    %1051 = vmatprep.subr.mxu0 0.0
    %1052 = vmatpush1.msra.mxu0 0.0
    %1053 = vmatprep.subr.mxu0 0.0
    %1054 = vmatpush1.msra.mxu0 0.0
    %1055 = vmatprep.subr.mxu0 0.0
    %1056 = vmatpush1.msra.mxu0 0.0
    %1057 = vmatprep.subr.mxu0 0.0
    %1058 = vmatpush1.msra.mxu0 0.0
    %1059 = vmatprep.subr.mxu0 0.0
    %1060 = vmatpush1.msra.mxu0 0.0
    %1061 = vmatprep.subr.mxu0 0.0
    %1062 = vmatpush1.msra.mxu0 0.0
    %1063 = vmatprep.subr.mxu0 0.0
    %1064 = vmatpush1.msra.mxu0 0.0
    %1065 = vmatprep.subr.mxu0 0.0
    %1066 = vmatpush1.msra.mxu0 0.0
    %1067 = vmatprep.subr.mxu0 0.0
    %1068 = vmatpush1.msra.mxu0 0.0
    %1069 = vmatprep.subr.mxu0 0.0
    %1070 = vmatpush1.msra.mxu0 0.0
    %1071 = vmatprep.subr.mxu0 0.0
    %1072 = vmatpush1.msra.mxu0 0.0
    %1073 = vmatprep.subr.mxu0 0.0
    %1074 = vmatpush1.msra.mxu0 0.0
    %1075 = vmatprep.subr.mxu0 0.0
    %1076 = vmatpush1.msra.mxu0 0.0
    %1077 = vmatprep.subr.mxu0 0.0
    %1078 = vmatpush1.msra.mxu0 0.0
    %1079 = vmatprep.subr.mxu0 0.0
    %1080 = vmatpush1.msra.mxu0 0.0
    %1081 = vmatprep.mubr.f32.mxu0 0.0
    %1082 = vmatmul.mubr.f32.gmra.mrb[0].mxu0 %v803
    %v1083 = vpop.f32.mrb[0].mxu0
    %v1084 = vadd.f32 %v1014, %v1083
    %v1085 = vpop.f32.mrb[0].mxu0
    %1086 = vdwg.mxu0
    %v1087 = vmax.f32 %v943, 0.0
    %v1088 = vmax.f32 %v945, 0.0
    %v1089 = vmax.f32 %v1084, 0.0
    %v1090 = vld [vmem:[%s7] sm:$0xff]
    %v1091 = vld [vmem:[%s7 + $0x8] sm:$0xff]
    %v1092 = vld [vmem:[%s7 + $0x10] sm:$0xff]
    %v1093 = vld [vmem:[%s7 + $0x18] sm:$0xff]
    %v1094 = vld [vmem:[%s7 + $0x20] sm:$0xff]
    %v1095 = vld [vmem:[%s7 + $0x28] sm:$0xff]
    %v1096 = vld [vmem:[%s7 + $0x30] sm:$0xff]
    %v1097 = vld [vmem:[%s7 + $0x38] sm:$0xff]
    %v1098 = vld [vmem:[%s7 + $0x40] sm:$0xff]
    %v1099 = vld [vmem:[%s7 + $0x48] sm:$0xff]
    %v1100 = vld [vmem:[%s7 + $0x50] sm:$0xff]
    %v1101 = vld [vmem:[%s7 + $0x58] sm:$0xff]
    %v1102 = vld [vmem:[%s7 + $0x60] sm:$0xff]
    %v1103 = vld [vmem:[%s7 + $0x68] sm:$0xff]
    %v1104 = vld [vmem:[%s7 + $0x70] sm:$0xff]
    %v1105 = vld [vmem:[%s7 + $0x78] sm:$0xff]
    %v1106 = vld [vmem:[%s7 + $0x80] sm:$0xff]
    %v1107 = vld [vmem:[%s7 + $0x88] sm:$0xff]
    %v1108 = vld [vmem:[%s7 + $0x90] sm:$0xff]
    %v1109 = vld [vmem:[%s7 + $0x98] sm:$0xff]
    %v1110 = vld [vmem:[%s7 + $0xa0] sm:$0xff]
    %v1111 = vld [vmem:[%s7 + $0xa8] sm:$0xff]
    %v1112 = vld [vmem:[%s7 + $0xb0] sm:$0xff]
    %v1113 = vld [vmem:[%s7 + $0xb8] sm:$0xff]
    %v1114 = vld [vmem:[%s7 + $0xc0] sm:$0xff]
    %v1115 = vld [vmem:[%s7 + $0xc8] sm:$0xff]
    %v1116 = vld [vmem:[%s7 + $0xd0] sm:$0xff]
    %v1117 = vld [vmem:[%s7 + $0xd8] sm:$0xff]
    %v1118 = vld [vmem:[%s7 + $0xe0] sm:$0xff]
    %v1119 = vld [vmem:[%s7 + $0xe8] sm:$0xff]
    %v1120 = vld [vmem:[%s7 + $0xf0] sm:$0xff]
    %v1121 = vld [vmem:[%s7 + $0xf8] sm:$0xff]
    %v1122 = vld [vmem:[%s7 + $0x100] sm:$0xff]
    %v1123 = vld [vmem:[%s7 + $0x108] sm:$0xff]
    %v1124 = vld [vmem:[%s7 + $0x110] sm:$0xff]
    %v1125 = vld [vmem:[%s7 + $0x118] sm:$0xff]
    %v1126 = vld [vmem:[%s7 + $0x120] sm:$0xff]
    %v1127 = vld [vmem:[%s7 + $0x128] sm:$0xff]
    %v1128 = vld [vmem:[%s7 + $0x130] sm:$0xff]
    %v1129 = vld [vmem:[%s7 + $0x138] sm:$0xff]
    %v1130 = vld [vmem:[%s7 + $0x140] sm:$0xff]
    %v1131 = vld [vmem:[%s7 + $0x148] sm:$0xff]
    %v1132 = vld [vmem:[%s7 + $0x150] sm:$0xff]
    %v1133 = vld [vmem:[%s7 + $0x158] sm:$0xff]
    %v1134 = vld [vmem:[%s7 + $0x160] sm:$0xff]
    %v1135 = vld [vmem:[%s7 + $0x168] sm:$0xff]
    %v1136 = vld [vmem:[%s7 + $0x170] sm:$0xff]
    %v1137 = vld [vmem:[%s7 + $0x178] sm:$0xff]
    %v1138 = vld [vmem:[%s7 + $0x180] sm:$0xff]
    %v1139 = vld [vmem:[%s7 + $0x188] sm:$0xff]
    %v1140 = vld [vmem:[%s7 + $0x190] sm:$0xff]
    %v1141 = vld [vmem:[%s7 + $0x198] sm:$0xff]
    %v1142 = vld [vmem:[%s7 + $0x1a0] sm:$0xff]
    %v1143 = vld [vmem:[%s7 + $0x1a8] sm:$0xff]
    %v1144 = vld [vmem:[%s7 + $0x1b0] sm:$0xff]
    %v1145 = vld [vmem:[%s7 + $0x1b8] sm:$0xff]
    %v1146 = vld [vmem:[%s7 + $0x1c0] sm:$0xff]
    %v1147 = vld [vmem:[%s7 + $0x1c8] sm:$0xff]
    %v1148 = vld [vmem:[%s7 + $0x1d0] sm:$0xff]
    %v1149 = vld [vmem:[%s7 + $0x1d8] sm:$0xff]
    %v1150 = vld [vmem:[%s7 + $0x1e0] sm:$0xff]
    %v1151 = vld [vmem:[%s7 + $0x1e8] sm:$0xff]
    %v1152 = vld [vmem:[%s7 + $0x1f0] sm:$0xff]
    %v1153 = vld [vmem:[%s7 + $0x1f8] sm:$0xff]
    %v1154 = vld [vmem:[%s7 + $0x200] sm:$0xff]
    %v1155 = vld [vmem:[%s7 + $0x208] sm:$0xff]
    %v1156 = vld [vmem:[%s7 + $0x210] sm:$0xff]
    %v1157 = vld [vmem:[%s7 + $0x218] sm:$0xff]
    %v1158 = vld [vmem:[%s7 + $0x220] sm:$0xff]
    %v1159 = vld [vmem:[%s7 + $0x228] sm:$0xff]
    %v1160 = vld [vmem:[%s7 + $0x230] sm:$0xff]
    %v1161 = vld [vmem:[%s7 + $0x238] sm:$0xff]
    %v1162 = vld [vmem:[%s7 + $0x240] sm:$0xff]
    %v1163 = vld [vmem:[%s7 + $0x248] sm:$0xff]
    %v1164 = vld [vmem:[%s7 + $0x250] sm:$0xff]
    %v1165 = vld [vmem:[%s7 + $0x258] sm:$0xff]
    %v1166 = vld [vmem:[%s7 + $0x260] sm:$0xff]
    %v1167 = vld [vmem:[%s7 + $0x268] sm:$0xff]
    %v1168 = vld [vmem:[%s7 + $0x270] sm:$0xff]
    %v1169 = vld [vmem:[%s7 + $0x278] sm:$0xff]
    %v1170 = vld [vmem:[%s8] sm:$0x3]
    %v1172 = vlaneseq
    %v1173 = vshrl.u32 %v1172, 7
    %v1174 = vsub.s32 0, %v1173
    %v1175 = vrot.slane %v1170, %v1174
    %v1176 = vlaneseq
    %v1177 = vshrl.u32 %v1176, 7
    %v1178 = vsub.s32 1, %v1177
    %v1179 = vrot.slane %v1170, %v1178
    %v1183 = vsel %vm376, %v1089, 0
    %1185 = vmatprep.subr.mxu0 %v1091
    %1186 = vmatpush1.msra.mxu0 %v1090
    %1187 = vmatprep.subr.mxu0 %v1093
    %1188 = vmatpush1.msra.mxu0 %v1092
    %1189 = vmatprep.subr.mxu0 %v1095
    %1190 = vmatpush1.msra.mxu0 %v1094
    %1191 = vmatprep.subr.mxu0 %v1097
    %1192 = vmatpush1.msra.mxu0 %v1096
    %1193 = vmatprep.subr.mxu0 %v1099
    %1194 = vmatpush1.msra.mxu0 %v1098
    %1195 = vmatprep.subr.mxu0 %v1101
    %1196 = vmatpush1.msra.mxu0 %v1100
    %1197 = vmatprep.subr.mxu0 %v1103
    %1198 = vmatpush1.msra.mxu0 %v1102
    %1199 = vmatprep.subr.mxu0 %v1105
    %1200 = vmatpush1.msra.mxu0 %v1104
    %1201 = vmatprep.subr.mxu0 %v1107
    %1202 = vmatpush1.msra.mxu0 %v1106
    %1203 = vmatprep.subr.mxu0 %v1109
    %1204 = vmatpush1.msra.mxu0 %v1108
    %1205 = vmatprep.subr.mxu0 %v1111
    %1206 = vmatpush1.msra.mxu0 %v1110
    %1207 = vmatprep.subr.mxu0 %v1113
    %1208 = vmatpush1.msra.mxu0 %v1112
    %1209 = vmatprep.subr.mxu0 %v1115
    %1210 = vmatpush1.msra.mxu0 %v1114
    %1211 = vmatprep.subr.mxu0 %v1117
    %1212 = vmatpush1.msra.mxu0 %v1116
    %1213 = vmatprep.subr.mxu0 %v1119
    %1214 = vmatpush1.msra.mxu0 %v1118
    %1215 = vmatprep.subr.mxu0 %v1121
    %1216 = vmatpush1.msra.mxu0 %v1120
    %1217 = vmatprep.subr.mxu0 %v1123
    %1218 = vmatpush1.msra.mxu0 %v1122
    %1219 = vmatprep.subr.mxu0 %v1125
    %1220 = vmatpush1.msra.mxu0 %v1124
    %1221 = vmatprep.subr.mxu0 %v1127
    %1222 = vmatpush1.msra.mxu0 %v1126
    %1223 = vmatprep.subr.mxu0 %v1129
    %1224 = vmatpush1.msra.mxu0 %v1128
    %1225 = vmatprep.subr.mxu0 %v1131
    %1226 = vmatpush1.msra.mxu0 %v1130
    %1227 = vmatprep.subr.mxu0 %v1133
    %1228 = vmatpush1.msra.mxu0 %v1132
    %1229 = vmatprep.subr.mxu0 %v1135
    %1230 = vmatpush1.msra.mxu0 %v1134
    %1231 = vmatprep.subr.mxu0 %v1137
    %1232 = vmatpush1.msra.mxu0 %v1136
    %1233 = vmatprep.subr.mxu0 %v1139
    %1234 = vmatpush1.msra.mxu0 %v1138
    %1235 = vmatprep.subr.mxu0 %v1141
    %1236 = vmatpush1.msra.mxu0 %v1140
    %1237 = vmatprep.subr.mxu0 %v1143
    %1238 = vmatpush1.msra.mxu0 %v1142
    %1239 = vmatprep.subr.mxu0 %v1145
    %1240 = vmatpush1.msra.mxu0 %v1144
    %1241 = vmatprep.subr.mxu0 %v1147
    %1242 = vmatpush1.msra.mxu0 %v1146
    %1243 = vmatprep.subr.mxu0 %v1149
    %1244 = vmatpush1.msra.mxu0 %v1148
    %1245 = vmatprep.subr.mxu0 %v1151
    %1246 = vmatpush1.msra.mxu0 %v1150
    %1247 = vmatprep.subr.mxu0 %v1153
    %1248 = vmatpush1.msra.mxu0 %v1152
    %1249 = vmatprep.mubr.f32.mxu0 %v1088
    %1250 = vmatmul.mubr.f32.gmra.mrb[0].mxu0 %v1087
    %v1251 = vpop.f32.mrb[0].mxu0
    %v1252 = vadd.f32 %v1175, %v1251
    %v1253 = vpop.f32.mrb[0].mxu0
    %v1254 = vadd.f32 %v1179, %v1253
    %1255 = vdwg.mxu0
    %1256 = vmatprep.subr.mxu0 %v1155
    %1257 = vmatpush1.msra.mxu0 %v1154
    %1258 = vmatprep.subr.mxu0 %v1157
    %1259 = vmatpush1.msra.mxu0 %v1156
    %1260 = vmatprep.subr.mxu0 %v1159
    %1261 = vmatpush1.msra.mxu0 %v1158
    %1262 = vmatprep.subr.mxu0 %v1161
    %1263 = vmatpush1.msra.mxu0 %v1160
    %1264 = vmatprep.subr.mxu0 %v1163
    %1265 = vmatpush1.msra.mxu0 %v1162
    %1266 = vmatprep.subr.mxu0 %v1165
    %1267 = vmatpush1.msra.mxu0 %v1164
    %1268 = vmatprep.subr.mxu0 %v1167
    %1269 = vmatpush1.msra.mxu0 %v1166
    %1270 = vmatprep.subr.mxu0 %v1169
    %1271 = vmatpush1.msra.mxu0 %v1168
    %1272 = vmatprep.subr.mxu0 0.0
    %1273 = vmatpush1.msra.mxu0 0.0
    %1274 = vmatprep.subr.mxu0 0.0
    %1275 = vmatpush1.msra.mxu0 0.0
    %1276 = vmatprep.subr.mxu0 0.0
    %1277 = vmatpush1.msra.mxu0 0.0
    %1278 = vmatprep.subr.mxu0 0.0
    %1279 = vmatpush1.msra.mxu0 0.0
    %1280 = vmatprep.subr.mxu0 0.0
    %1281 = vmatpush1.msra.mxu0 0.0
    %1282 = vmatprep.subr.mxu0 0.0
    %1283 = vmatpush1.msra.mxu0 0.0
    %1284 = vmatprep.subr.mxu0 0.0
    %1285 = vmatpush1.msra.mxu0 0.0
    %1286 = vmatprep.subr.mxu0 0.0
    %1287 = vmatpush1.msra.mxu0 0.0
    %1288 = vmatprep.subr.mxu0 0.0
    %1289 = vmatpush1.msra.mxu0 0.0
    %1290 = vmatprep.subr.mxu0 0.0
    %1291 = vmatpush1.msra.mxu0 0.0
    %1292 = vmatprep.subr.mxu0 0.0
    %1293 = vmatpush1.msra.mxu0 0.0
    %1294 = vmatprep.subr.mxu0 0.0
    %1295 = vmatpush1.msra.mxu0 0.0
    %1296 = vmatprep.subr.mxu0 0.0
    %1297 = vmatpush1.msra.mxu0 0.0
    %1298 = vmatprep.subr.mxu0 0.0
    %1299 = vmatpush1.msra.mxu0 0.0
    %1300 = vmatprep.subr.mxu0 0.0
    %1301 = vmatpush1.msra.mxu0 0.0
    %1302 = vmatprep.subr.mxu0 0.0
    %1303 = vmatpush1.msra.mxu0 0.0
    %1304 = vmatprep.subr.mxu0 0.0
    %1305 = vmatpush1.msra.mxu0 0.0
    %1306 = vmatprep.subr.mxu0 0.0
    %1307 = vmatpush1.msra.mxu0 0.0
    %1308 = vmatprep.subr.mxu0 0.0
    %1309 = vmatpush1.msra.mxu0 0.0
    %1310 = vmatprep.subr.mxu0 0.0
    %1311 = vmatpush1.msra.mxu0 0.0
    %1312 = vmatprep.subr.mxu0 0.0
    %1313 = vmatpush1.msra.mxu0 0.0
    %1314 = vmatprep.subr.mxu0 0.0
    %1315 = vmatpush1.msra.mxu0 0.0
    %1316 = vmatprep.subr.mxu0 0.0
    %1317 = vmatpush1.msra.mxu0 0.0
    %1318 = vmatprep.subr.mxu0 0.0
    %1319 = vmatpush1.msra.mxu0 0.0
    %1320 = vmatprep.mubr.f32.mxu0 0.0
    %1321 = vmatmul.mubr.f32.gmra.mrb[0].mxu0 %v1183
    %v1322 = vpop.f32.mrb[0].mxu0
    %v1323 = vadd.f32 %v1252, %v1322
    %v1324 = vpop.f32.mrb[0].mxu0
    %v1325 = vadd.f32 %v1254, %v1324
    %1326 = vdwg.mxu0
    %v1327 = vmax.f32 %v1323, 0.0
    %v1328 = vmax.f32 %v1325, 0.0
    %v1329 = vld [vmem:[%s9] sm:$0xff]
    %v1330 = vld [vmem:[%s9 + $0x8] sm:$0xff]
    %v1331 = vld [vmem:[%s9 + $0x10] sm:$0xff]
    %v1332 = vld [vmem:[%s9 + $0x18] sm:$0xff]
    %v1333 = vld [vmem:[%s9 + $0x20] sm:$0xff]
    %v1334 = vld [vmem:[%s9 + $0x28] sm:$0xff]
    %v1335 = vld [vmem:[%s9 + $0x30] sm:$0xff]
    %v1336 = vld [vmem:[%s9 + $0x38] sm:$0xff]
    %v1337 = vld [vmem:[%s9 + $0x40] sm:$0xff]
    %v1338 = vld [vmem:[%s9 + $0x48] sm:$0xff]
    %v1339 = vld [vmem:[%s9 + $0x50] sm:$0xff]
    %v1340 = vld [vmem:[%s9 + $0x58] sm:$0xff]
    %v1341 = vld [vmem:[%s9 + $0x60] sm:$0xff]
    %v1342 = vld [vmem:[%s9 + $0x68] sm:$0xff]
    %v1343 = vld [vmem:[%s9 + $0x70] sm:$0xff]
    %v1344 = vld [vmem:[%s9 + $0x78] sm:$0xff]
    %v1345 = vld [vmem:[%s9 + $0x80] sm:$0xff]
    %v1346 = vld [vmem:[%s9 + $0x88] sm:$0xff]
    %v1347 = vld [vmem:[%s9 + $0x90] sm:$0xff]
    %v1348 = vld [vmem:[%s9 + $0x98] sm:$0xff]
    %v1349 = vld [vmem:[%s10] sm:$0x1]
    %v1351 = vlaneseq
    %v1352 = vshrl.u32 %v1351, 7
    %v1353 = vsub.s32 0, %v1352
    %v1354 = vrot.slane %v1349, %v1353
    %vm1356 = vcmask 261120
    %v1358 = vsel %vm1356, %v1328, 0
    %1360 = vmatprep.subr.mxu0 0.0
    %1361 = vmatpush1.msra.mxu0 %v1329
    %1362 = vmatprep.subr.mxu0 0.0
    %1363 = vmatpush1.msra.mxu0 %v1330
    %1364 = vmatprep.subr.mxu0 0.0
    %1365 = vmatpush1.msra.mxu0 %v1331
    %1366 = vmatprep.subr.mxu0 0.0
    %1367 = vmatpush1.msra.mxu0 %v1332
    %1368 = vmatprep.subr.mxu0 0.0
    %1369 = vmatpush1.msra.mxu0 %v1333
    %1370 = vmatprep.subr.mxu0 0.0
    %1371 = vmatpush1.msra.mxu0 %v1334
    %1372 = vmatprep.subr.mxu0 0.0
    %1373 = vmatpush1.msra.mxu0 %v1335
    %1374 = vmatprep.subr.mxu0 0.0
    %1375 = vmatpush1.msra.mxu0 %v1336
    %1376 = vmatprep.subr.mxu0 0.0
    %1377 = vmatpush1.msra.mxu0 %v1337
    %1378 = vmatprep.subr.mxu0 0.0
    %1379 = vmatpush1.msra.mxu0 %v1338
    %1380 = vmatprep.subr.mxu0 0.0
    %1381 = vmatpush1.msra.mxu0 %v1339
    %1382 = vmatprep.subr.mxu0 0.0
    %1383 = vmatpush1.msra.mxu0 %v1340
    %1384 = vmatprep.subr.mxu0 0.0
    %1385 = vmatpush1.msra.mxu0 %v1341
    %1386 = vmatprep.subr.mxu0 0.0
    %1387 = vmatpush1.msra.mxu0 %v1342
    %1388 = vmatprep.subr.mxu0 0.0
    %1389 = vmatpush1.msra.mxu0 %v1343
    %1390 = vmatprep.subr.mxu0 0.0
    %1391 = vmatpush1.msra.mxu0 %v1344
    %1392 = vmatprep.subr.mxu0 0.0
    %1393 = vmatpush1.msra.mxu0 %v1345
    %1394 = vmatprep.subr.mxu0 0.0
    %1395 = vmatpush1.msra.mxu0 %v1346
    %1396 = vmatprep.subr.mxu0 0.0
    %1397 = vmatpush1.msra.mxu0 %v1347
    %1398 = vmatprep.subr.mxu0 0.0
    %1399 = vmatpush1.msra.mxu0 %v1348
    %1400 = vmatprep.subr.mxu0 0.0
    %1401 = vmatpush1.msra.mxu0 0.0
    %1402 = vmatprep.subr.mxu0 0.0
    %1403 = vmatpush1.msra.mxu0 0.0
    %1404 = vmatprep.subr.mxu0 0.0
    %1405 = vmatpush1.msra.mxu0 0.0
    %1406 = vmatprep.subr.mxu0 0.0
    %1407 = vmatpush1.msra.mxu0 0.0
    %1408 = vmatprep.subr.mxu0 0.0
    %1409 = vmatpush1.msra.mxu0 0.0
    %1410 = vmatprep.subr.mxu0 0.0
    %1411 = vmatpush1.msra.mxu0 0.0
    %1412 = vmatprep.subr.mxu0 0.0
    %1413 = vmatpush1.msra.mxu0 0.0
    %1414 = vmatprep.subr.mxu0 0.0
    %1415 = vmatpush1.msra.mxu0 0.0
    %1416 = vmatprep.subr.mxu0 0.0
    %1417 = vmatpush1.msra.mxu0 0.0
    %1418 = vmatprep.subr.mxu0 0.0
    %1419 = vmatpush1.msra.mxu0 0.0
    %1420 = vmatprep.subr.mxu0 0.0
    %1421 = vmatpush1.msra.mxu0 0.0
    %1422 = vmatprep.subr.mxu0 0.0
    %1423 = vmatpush1.msra.mxu0 0.0
    %1424 = vmatprep.mubr.f32.mxu0 %v1358
    %1425 = vmatmul.mubr.f32.gmra.mrb[0].mxu0 %v1327
    %v1426 = vpop.f32.mrb[0].mxu0
    %v1427 = vadd.f32 %v1354, %v1426
    %v1428 = vpop.f32.mrb[0].mxu0
    %1429 = vdwg.mxu0
    %v1430 = vmax.f32 %v1427, 0.0
    %v1431 = vld [vmem:[%s11] sm:$0xff]
    %v1432 = vld [vmem:[%s11 + $0x8] sm:$0xff]
    %v1433 = vld [vmem:[%s12] sm:$0x1]
    %v1435 = vlaneseq
    %v1436 = vshrl.u32 %v1435, 7
    %v1437 = vsub.s32 0, %v1436
    %v1438 = vrot.slane %v1433, %v1437
    %v1441 = vsel %vm91, %v1430, 0
    %1443 = vmatprep.subr.mxu0 0.0
    %1444 = vmatpush1.msra.mxu0 %v1431
    %1445 = vmatprep.subr.mxu0 0.0
    %1446 = vmatpush1.msra.mxu0 %v1432
    %1447 = vmatprep.subr.mxu0 0.0
    %1448 = vmatpush1.msra.mxu0 0.0
    %1449 = vmatprep.subr.mxu0 0.0
    %1450 = vmatpush1.msra.mxu0 0.0
    %1451 = vmatprep.subr.mxu0 0.0
    %1452 = vmatpush1.msra.mxu0 0.0
    %1453 = vmatprep.subr.mxu0 0.0
    %1454 = vmatpush1.msra.mxu0 0.0
    %1455 = vmatprep.subr.mxu0 0.0
    %1456 = vmatpush1.msra.mxu0 0.0
    %1457 = vmatprep.subr.mxu0 0.0
    %1458 = vmatpush1.msra.mxu0 0.0
    %1459 = vmatprep.subr.mxu0 0.0
    %1460 = vmatpush1.msra.mxu0 0.0
    %1461 = vmatprep.subr.mxu0 0.0
    %1462 = vmatpush1.msra.mxu0 0.0
    %1463 = vmatprep.subr.mxu0 0.0
    %1464 = vmatpush1.msra.mxu0 0.0
    %1465 = vmatprep.subr.mxu0 0.0
    %1466 = vmatpush1.msra.mxu0 0.0
    %1467 = vmatprep.subr.mxu0 0.0
    %1468 = vmatpush1.msra.mxu0 0.0
    %1469 = vmatprep.subr.mxu0 0.0
    %1470 = vmatpush1.msra.mxu0 0.0
    %1471 = vmatprep.subr.mxu0 0.0
    %1472 = vmatpush1.msra.mxu0 0.0
    %1473 = vmatprep.subr.mxu0 0.0
    %1474 = vmatpush1.msra.mxu0 0.0
    %1475 = vmatprep.subr.mxu0 0.0
    %1476 = vmatpush1.msra.mxu0 0.0
    %1477 = vmatprep.subr.mxu0 0.0
    %1478 = vmatpush1.msra.mxu0 0.0
    %1479 = vmatprep.subr.mxu0 0.0
    %1480 = vmatpush1.msra.mxu0 0.0
    %1481 = vmatprep.subr.mxu0 0.0
    %1482 = vmatpush1.msra.mxu0 0.0
    %1483 = vmatprep.subr.mxu0 0.0
    %1484 = vmatpush1.msra.mxu0 0.0
    %1485 = vmatprep.subr.mxu0 0.0
    %1486 = vmatpush1.msra.mxu0 0.0
    %1487 = vmatprep.subr.mxu0 0.0
    %1488 = vmatpush1.msra.mxu0 0.0
    %1489 = vmatprep.subr.mxu0 0.0
    %1490 = vmatpush1.msra.mxu0 0.0
    %1491 = vmatprep.subr.mxu0 0.0
    %1492 = vmatpush1.msra.mxu0 0.0
    %1493 = vmatprep.subr.mxu0 0.0
    %1494 = vmatpush1.msra.mxu0 0.0
    %1495 = vmatprep.subr.mxu0 0.0
    %1496 = vmatpush1.msra.mxu0 0.0
    %1497 = vmatprep.subr.mxu0 0.0
    %1498 = vmatpush1.msra.mxu0 0.0
    %1499 = vmatprep.subr.mxu0 0.0
    %1500 = vmatpush1.msra.mxu0 0.0
    %1501 = vmatprep.subr.mxu0 0.0
    %1502 = vmatpush1.msra.mxu0 0.0
    %1503 = vmatprep.subr.mxu0 0.0
    %1504 = vmatpush1.msra.mxu0 0.0
    %1505 = vmatprep.subr.mxu0 0.0
    %1506 = vmatpush1.msra.mxu0 0.0
    %1507 = vmatprep.mubr.f32.mxu0 0.0
    %1508 = vmatmul.mubr.f32.gmra.mrb[0].mxu0 %v1441
    %v1509 = vpop.f32.mrb[0].mxu0
    %v1510 = vadd.f32 %v1438, %v1509
    %v1511 = vpop.f32.mrb[0].mxu0
    %1512 = vdwg.mxu0
    %v1513 = vtanh.pop %v1510
    %v1514 = vld [vmem:[%s13] sm:$0x1]
    %v1516 = vlaneseq
    %v1517 = vshrl.u32 %v1516, 7
    %v1518 = vsub.s32 0, %v1517
    %v1519 = vrot.slane %v1514, %v1518
    %v1521 = vmul.f32 %v1513, %v1519
    %vm1522 = vcmask 31744
    %v1523 = vsel %vm1522, %v1521, 0.0
    %1524 = vadd.xlane.f32.xlu0 %v1523
    %v1525 = vpop.xlane.xlu0 %1524
    %v1526 = vld [vmem:[#allocation2] sm:$0x1]
    %v1528 = vlaneseq
    %v1529 = vshrl.u32 %v1528, 7
    %v1530 = vsub.s32 0, %v1529
    %v1531 = vrot.slane %v1526, %v1530
    %v1533 = vadd.f32 %v1525, %v1531
    %1534 = vxpose.xlu0.b32.start [1/16] %v1533, 128
    %1535 = vxpose.xlu0.b32.cont [2/16] 0.0, 128
    %1536 = vxpose.xlu0.b32.cont [3/16] 0.0, 128
    %1537 = vxpose.xlu0.b32.cont [4/16] 0.0, 128
    %1538 = vxpose.xlu0.b32.cont [5/16] 0.0, 128
    %1539 = vxpose.xlu0.b32.cont [6/16] 0.0, 128
    %1540 = vxpose.xlu0.b32.cont [7/16] 0.0, 128
    %1541 = vxpose.xlu0.b32.cont [8/16] 0.0, 128
    %1542 = vxpose.xlu0.b32.cont [9/16] 0.0, 128
    %1543 = vxpose.xlu0.b32.cont [10/16] 0.0, 128
    %1544 = vxpose.xlu0.b32.cont [11/16] 0.0, 128
    %1545 = vxpose.xlu0.b32.cont [12/16] 0.0, 128
    %1546 = vxpose.xlu0.b32.cont [13/16] 0.0, 128
    %1547 = vxpose.xlu0.b32.cont [14/16] 0.0, 128
    %1548 = vxpose.xlu0.b32.cont [15/16] 0.0, 128
    %1549 = vxpose.xlu0.b32.end [16/16] 0.0, 128
    %v1550 = vpop.trf.xlu0
    %v1551 = vpop.trf.xlu0
    %v1552 = vpop.trf.xlu0
    %v1553 = vpop.trf.xlu0
    %v1554 = vpop.trf.xlu0
    %v1555 = vpop.trf.xlu0
    %v1556 = vpop.trf.xlu0
    %v1557 = vpop.trf.xlu0
    %v1558 = vpop.trf.xlu0
    %v1559 = vpop.trf.xlu0
    %v1560 = vpop.trf.xlu0
    %v1561 = vpop.trf.xlu0
    %v1562 = vpop.trf.xlu0
    %v1563 = vpop.trf.xlu0
    %v1564 = vpop.trf.xlu0
    %v1565 = vpop.trf.xlu0
    %vm1566 = vcmask 57344
    %1567 = vst.msk [vmem:[#allocation6] sm:$0x1] %vm1566, %v1550
    // Predicated region
    $region66: #{tpu_custom_call.1} parent=1 // pred_check
      _
    $region67: #{tpu_custom_call.1} parent=1 // pred_check_branch
      %1569 = sbr.rel (0) target = $region69
    $region68: #{tpu_custom_call.1} parent=1 // pred_region
      %s1571 = ssub.s32 16, 16
      %1572 = vsyncadd [#allocation5], %s1571
      %s1574 = sshll.u32 [#allocation6], 4
      %s1575 = int_to_ptr.vmem [resolvable:$true] %s1574
      %1577 = dma.vmem_to_hbm [thread:$0]  %s1575, 16, %s15, [#allocation5]
    $region69: #{tpu_custom_call.1} parent=1 // pred_fallthru
      _
    // Predicated region
    $region70: #{tpu_custom_call.1} parent=1 // pred_check
      _
    $region71: #{tpu_custom_call.1} parent=1 // pred_check_branch
      %1579 = sbr.rel (0) target = $region73
    $region72: #{tpu_custom_call.1} parent=1 // pred_region
      %1580 = dma.done [#allocation5], 16
    $region73: #{tpu_custom_call.1} parent=1 // pred_fallthru
      _
    %1581 = vsyncpa [#allocation4], 1
    %1582 = vsyncpa [#allocation5], 1

</llo_original>
